<compile_context>
chip_gen: v5e
topology: v5e:2x2
jax: 0.10.0
libtpu: 0.0.40
codegen_flags: <defaults>
</compile_context>

<pallas_src>
import jax
import jax.numpy as jnp
from jax.experimental import pallas as pl
from jax.experimental.pallas import tpu as pltpu

# ---------------- model hyper-parameters (small synthetic sizes) ----------------
B = 2          # batch
T = 8          # sequence length
IN_DIM = 16    # audio in_dim
TEXT_DIM = 8   # text_dim
OUT_DIM = 32   # out_dim
C_IN = 2 * IN_DIM + TEXT_DIM   # 40
KSIZE = 31     # ConvolutionalPositionEmbedding kernel size
GROUPS = 16    # ConvolutionalPositionEmbedding groups
CPG = OUT_DIM // GROUPS        # channels per group (in == out here) = 2
PAD = (KSIZE - 1) // 2


# --------------------------------- kernel ---------------------------------------
def _mish_fast(x):
    # mish(x) = x*tanh(softplus(x)) = x*((1+e^x)^2 - 1)/((1+e^x)^2 + 1)
    # One exp (EUP) + one approx reciprocal (EUP) instead of exp+log1p+tanh.
    # Clamp: for x > 20, mish(x) == x to f32 precision, and exp stays finite.
    t = jnp.exp(jnp.minimum(x, 20.0))
    s = (1.0 + t) * (1.0 + t)
    return x * (s - 1.0) * pl.reciprocal(s + 1.0, approx=True)


def audio_text_embed_kernel(xc_ref, wp_ref, bp_ref, g_ref,
                            w1_ref, b1_ref, w2_ref, b2_ref,
                            o_ref, buf_ref):
    """Single grid step — whole batch.

    xc_ref : (B*T, C_IN)        concatenated [x, cond, text], batch folded into rows
    wp_ref : (C_IN, D)          projection weight (pre-transposed)
    bp_ref : (1, D)             projection bias
    g_ref  : (D, CPG*D)         one-hot group-gather matrix
    w1/w2  : (K, CPG*D)         per-tap grouped conv weights (NOT densified)
    b1/b2  : (1, D)             conv biases
    o_ref  : (B*T, D)           output (residual included)
    buf_ref: (B, T+K-1, CPG*D)  shared VMEM scratch for 'same' padding
    """
    f32 = jnp.float32
    bt = xc_ref.shape[0]
    d = wp_ref.shape[1]
    k_size, cd = w1_ref.shape
    cpg = cd // d
    b = buf_ref.shape[0]
    t = bt // b
    pad = (k_size - 1) // 2

    # Zero ONLY the pad rows of the scratch, once; both conv layers reuse them.
    if pad > 0:
        zpad = jnp.zeros((b, pad, cd), f32)
        buf_ref[:, pl.ds(0, pad), :] = zpad
        buf_ref[:, pl.ds(pad + t, pad), :] = zpad

    g_mat = g_ref[...]   # (D, CPG*D), hoisted — used by both conv layers

    # ---- projection: one MXU matmul for the whole batch, bias folded in ----
    h = jnp.dot(xc_ref[...], wp_ref[...], preferred_element_type=f32) + bp_ref[...]

    def conv_mish(x_flat, w_ref, b_ref):
        # Group gather: lane (j*D + o) holds input channel (o // CPG)*CPG + j.
        # Done once per layer (instead of per tap) on the otherwise-idle MXU.
        xg = jnp.dot(x_flat, g_mat, preferred_element_type=f32)       # (B*T, CPG*D)
        buf_ref[:, pl.ds(pad, t), :] = xg.reshape(b, t, cd)

        w_taps = w_ref[...]                                           # (K, CPG*D)
        acc = jnp.zeros((b, t, cd), f32)
        for k in range(k_size):       # static unroll: K VPU FMAs on (B, T, CPG*D) tiles
            acc = acc + buf_ref[:, pl.ds(k, t), :] * w_taps[k]

        y = acc[..., :d]
        for j in range(1, cpg):                                       # fold CPG input slabs
            y = y + acc[..., j * d:(j + 1) * d]
        y = y + b_ref[...]                                            # bias in epilogue
        return _mish_fast(y).reshape(bt, d)

    y = conv_mish(h, w1_ref, b1_ref)
    y = conv_mish(y, w2_ref, b2_ref)

    # Residual. (Masked store only because OUT_DIM=32 < 128 at this toy size.)
    o_ref[...] = (y + h).astype(o_ref.dtype)


# ------------------------------- wrapper -----------------------------------------
def _group_gather_matrix(d, cpg, dtype=jnp.float32):
    """(D, CPG*D) one-hot matrix: column j*D+o selects input channel (o//CPG)*CPG + j."""
    o = jnp.arange(d)
    slabs = []
    for j in range(cpg):
        src = (o // cpg) * cpg + j                              # (D,) source channel per output
        slabs.append(jax.nn.one_hot(src, d, dtype=dtype).T)     # (D_in, D_out)
    return jnp.concatenate(slabs, axis=1)


def _conv_taps(w):
    """(D, CPG, K) grouped Conv1d weight -> (K, CPG*D) per-tap rows: [k, j*D+o] = w[o, j, k]."""
    d, cpg, k = w.shape
    return jnp.transpose(w, (2, 1, 0)).reshape(k, cpg * d)


def audio_text_embedding(x, cond, text, params, drop_audio_cond=False):
    if drop_audio_cond:
        cond = jnp.zeros_like(cond)
    b, t, _ = x.shape
    xc = jnp.concatenate([x, cond, text], axis=-1).reshape(b * t, C_IN)   # fold batch into M

    wp = params["w_proj"].T                              # (C_IN, D)
    bp = params["b_proj"].reshape(1, OUT_DIM)
    g = _group_gather_matrix(OUT_DIM, CPG)               # (D, CPG*D)
    w1 = _conv_taps(params["w_conv1"])                   # (K, CPG*D)  ~8 KB, no densification
    b1 = params["b_conv1"].reshape(1, OUT_DIM)
    w2 = _conv_taps(params["w_conv2"])
    b2 = params["b_conv2"].reshape(1, OUT_DIM)

    def full(shape):
        zero = (0,) * len(shape)
        return pl.BlockSpec(shape, lambda i, _z=zero: _z)

    grid_spec = pltpu.PrefetchScalarGridSpec(
        num_scalar_prefetch=0,
        grid=(1,),   # single step: per-step pipeline overhead dominates at these sizes
        in_specs=[
            full((b * t, C_IN)),
            full((C_IN, OUT_DIM)),
            full((1, OUT_DIM)),
            full((OUT_DIM, CPG * OUT_DIM)),
            full((KSIZE, CPG * OUT_DIM)),
            full((1, OUT_DIM)),
            full((KSIZE, CPG * OUT_DIM)),
            full((1, OUT_DIM)),
        ],
        out_specs=full((b * t, OUT_DIM)),
        scratch_shapes=[pltpu.VMEM((b, t + KSIZE - 1, CPG * OUT_DIM), jnp.float32)],
    )

    out = pl.pallas_call(
        audio_text_embed_kernel,
        out_shape=jax.ShapeDtypeStruct((b * t, OUT_DIM), jnp.float32),
        grid_spec=grid_spec,
        compiler_params=pltpu.CompilerParams(
            dimension_semantics=("arbitrary",),
            vmem_limit_bytes=32 * 1024 * 1024,
        ),
    )(xc, wp, bp, g, w1, b1, w2, b2)
    return out.reshape(b, t, OUT_DIM)


# --------------------------- pure-JAX reference ----------------------------------
def _mish_exact(x):
    return x * jnp.tanh(jax.nn.softplus(x))


def reference_forward(x, cond, text, params, drop_audio_cond=False):
    if drop_audio_cond:
        cond = jnp.zeros_like(cond)
    xc = jnp.concatenate([x, cond, text], axis=-1)
    h = xc @ params["w_proj"].T + params["b_proj"]

    def conv_mish(h_btd, w, b):
        y = jax.lax.conv_general_dilated(
            jnp.transpose(h_btd, (0, 2, 1)), w, window_strides=(1,),
            padding=[(PAD, PAD)], feature_group_count=GROUPS,
            dimension_numbers=("NCH", "OIH", "NCH"))
        y = y + b[None, :, None]
        return jnp.transpose(_mish_exact(y), (0, 2, 1))

    y = conv_mish(conv_mish(h, params["w_conv1"], params["b_conv1"]),
                  params["w_conv2"], params["b_conv2"])
    return y + h


# ------------------------------------ main ---------------------------------------
if __name__ == "__main__":
    key = jax.random.PRNGKey(0)
    keys = jax.random.split(key, 9)

    x = jax.random.normal(keys[0], (B, T, IN_DIM), jnp.float32)
    cond = jax.random.normal(keys[1], (B, T, IN_DIM), jnp.float32)
    text = jax.random.normal(keys[2], (B, T, TEXT_DIM), jnp.float32)

    params = {
        # nn.Linear(2*in_dim + text_dim, out_dim)
        "w_proj": 0.05 * jax.random.normal(keys[3], (OUT_DIM, C_IN), jnp.float32),
        "b_proj": 0.05 * jax.random.normal(keys[4], (OUT_DIM,), jnp.float32),
        # nn.Conv1d(out_dim, out_dim, 31, groups=16) x2
        "w_conv1": 0.05 * jax.random.normal(keys[5], (OUT_DIM, CPG, KSIZE), jnp.float32),
        "b_conv1": 0.05 * jax.random.normal(keys[6], (OUT_DIM,), jnp.float32),
        "w_conv2": 0.05 * jax.random.normal(keys[7], (OUT_DIM, CPG, KSIZE), jnp.float32),
        "b_conv2": 0.05 * jax.random.normal(keys[8], (OUT_DIM,), jnp.float32),
    }

    out = audio_text_embedding(x, cond, text, params, drop_audio_cond=False)
    out = jax.block_until_ready(out)

    ref = reference_forward(x, cond, text, params, drop_audio_cond=False)
    assert out.shape == (B, T, OUT_DIM)
    # Tolerance slightly relaxed vs. exact Mish: the kernel uses the EUP
    # approx-reciprocal Mish identity (error well below 1e-3 at these scales).
    err = jnp.max(jnp.abs(out - ref))
    assert jnp.allclose(out, ref, atol=1e-3, rtol=1e-3), f"max abs err {err}"

    print("KERNEL_OK")
</pallas_src>

<mosaic_0001>
module attributes {stable_mosaic.version = 11 : i64} {
  func.func @audio_text_embed_kernel(%arg0: i32, %arg1: memref<16x40xf32, #tpu.memory_space<vmem>>, %arg2: memref<40x32xf32, #tpu.memory_space<vmem>>, %arg3: memref<1x32xf32, #tpu.memory_space<vmem>>, %arg4: memref<32x64xf32, #tpu.memory_space<vmem>>, %arg5: memref<31x64xf32, #tpu.memory_space<vmem>>, %arg6: memref<1x32xf32, #tpu.memory_space<vmem>>, %arg7: memref<31x64xf32, #tpu.memory_space<vmem>>, %arg8: memref<1x32xf32, #tpu.memory_space<vmem>>, %arg9: memref<16x32xf32, #tpu.memory_space<vmem>>, %arg10: memref<2x38x64xf32, #tpu.memory_space<vmem>>) attributes {dimension_semantics = [#tpu.dimension_semantics<arbitrary>], iteration_bounds = array<i64: 1>, scalar_prefetch = 0 : i64, scratch_operands = 1 : i64, tpu.core_type = #tpu.core_type<tc>, window_params = [{pipeline_mode = #tpu.pipeline_mode<synchronous>, transform_indices = @transform_0, window_bounds = array<i64: 16, 40>}, {pipeline_mode = #tpu.pipeline_mode<synchronous>, transform_indices = @transform_1, window_bounds = array<i64: 40, 32>}, {pipeline_mode = #tpu.pipeline_mode<synchronous>, transform_indices = @transform_2, window_bounds = array<i64: 1, 32>}, {pipeline_mode = #tpu.pipeline_mode<synchronous>, transform_indices = @transform_3, window_bounds = array<i64: 32, 64>}, {pipeline_mode = #tpu.pipeline_mode<synchronous>, transform_indices = @transform_4, window_bounds = array<i64: 31, 64>}, {pipeline_mode = #tpu.pipeline_mode<synchronous>, transform_indices = @transform_5, window_bounds = array<i64: 1, 32>}, {pipeline_mode = #tpu.pipeline_mode<synchronous>, transform_indices = @transform_6, window_bounds = array<i64: 31, 64>}, {pipeline_mode = #tpu.pipeline_mode<synchronous>, transform_indices = @transform_7, window_bounds = array<i64: 1, 32>}, {pipeline_mode = #tpu.pipeline_mode<synchronous>, transform_indices = @transform_8, window_bounds = array<i64: 16, 32>}]} {
    %cst = arith.constant 0.000000e+00 : f32
    %0 = vector.broadcast %cst : f32 to vector<2x15x64xf32>
    %c0 = arith.constant 0 : index
    %c0_0 = arith.constant 0 : index
    %c0_1 = arith.constant 0 : index
    %1 = vector.load %arg10[%c0, %c0_0, %c0_1] : memref<2x38x64xf32, #tpu.memory_space<vmem>>, vector<2x15x64xf32>
    tpu.vector_store %arg10[%c0, %c0_0, %c0_1], %0 {strides = array<i32>} : memref<2x38x64xf32, #tpu.memory_space<vmem>>, vector<2x15x64xf32>,
    %c0_2 = arith.constant 0 : index
    %c23 = arith.constant 23 : index
    %c0_3 = arith.constant 0 : index
    %2 = vector.load %arg10[%c0_2, %c23, %c0_3] : memref<2x38x64xf32, #tpu.memory_space<vmem>>, vector<2x15x64xf32>
    tpu.vector_store %arg10[%c0_2, %c23, %c0_3], %0 {strides = array<i32>} : memref<2x38x64xf32, #tpu.memory_space<vmem>>, vector<2x15x64xf32>,
    %c0_4 = arith.constant 0 : index
    %c0_5 = arith.constant 0 : index
    %3 = vector.load %arg4[%c0_4, %c0_5] : memref<32x64xf32, #tpu.memory_space<vmem>>, vector<32x64xf32>
    %c0_6 = arith.constant 0 : index
    %c0_7 = arith.constant 0 : index
    %4 = vector.load %arg1[%c0_6, %c0_7] : memref<16x40xf32, #tpu.memory_space<vmem>>, vector<16x40xf32>
    %c0_8 = arith.constant 0 : index
    %c0_9 = arith.constant 0 : index
    %5 = vector.load %arg2[%c0_8, %c0_9] : memref<40x32xf32, #tpu.memory_space<vmem>>, vector<40x32xf32>
    %cst_10 = arith.constant dense<0.000000e+00> : vector<16x32xf32>
    %6 = tpu.matmul %4, %5, %cst_10 {dimension_numbers = #tpu.dot_dimension_numbers<[1], [0], [0], [1], [0, 0, 1, 1], [], []>} : vector<16x40xf32>, vector<40x32xf32>, vector<16x32xf32> -> vector<16x32xf32>
    %c0_11 = arith.constant 0 : index
    %c0_12 = arith.constant 0 : index
    %7 = vector.load %arg3[%c0_11, %c0_12] : memref<1x32xf32, #tpu.memory_space<vmem>>, vector<1x32xf32>
    %8 = vector.broadcast %7 : vector<1x32xf32> to vector<16x32xf32>
    %9 = arith.addf %6, %8 : vector<16x32xf32>
    %cst_13 = arith.constant dense<0.000000e+00> : vector<16x64xf32>
    %10 = tpu.matmul %9, %3, %cst_13 {dimension_numbers = #tpu.dot_dimension_numbers<[1], [0], [0], [1], [0, 0, 1, 1], [], []>} : vector<16x32xf32>, vector<32x64xf32>, vector<16x64xf32> -> vector<16x64xf32>
    %11 = vector.shape_cast %10 : vector<16x64xf32> to vector<2x8x64xf32>
    %c0_14 = arith.constant 0 : index
    %c15 = arith.constant 15 : index
    %c0_15 = arith.constant 0 : index
    %12 = vector.load %arg10[%c0_14, %c15, %c0_15] : memref<2x38x64xf32, #tpu.memory_space<vmem>>, vector<2x8x64xf32>
    tpu.vector_store %arg10[%c0_14, %c15, %c0_15], %11 {strides = array<i32>} : memref<2x38x64xf32, #tpu.memory_space<vmem>>, vector<2x8x64xf32>,
    %c0_16 = arith.constant 0 : index
    %c0_17 = arith.constant 0 : index
    %13 = vector.load %arg5[%c0_16, %c0_17] : memref<31x64xf32, #tpu.memory_space<vmem>>, vector<31x64xf32>
    %cst_18 = arith.constant 0.000000e+00 : f32
    %14 = vector.broadcast %cst_18 : f32 to vector<2x8x64xf32>
    %c0_19 = arith.constant 0 : index
    %c0_20 = arith.constant 0 : index
    %c0_21 = arith.constant 0 : index
    %15 = vector.load %arg10[%c0_19, %c0_20, %c0_21] : memref<2x38x64xf32, #tpu.memory_space<vmem>>, vector<2x8x64xf32>
    %16 = vector.extract_strided_slice %13 {offsets = [0, 0], sizes = [1, 64], strides = [1, 1]} : vector<31x64xf32> to vector<1x64xf32>
    %17 = vector.shape_cast %16 : vector<1x64xf32> to vector<64xf32>
    %18 = vector.shape_cast %17 : vector<64xf32> to vector<1x1x64xf32>
    %19 = vector.broadcast %18 : vector<1x1x64xf32> to vector<2x8x64xf32>
    %20 = arith.mulf %15, %19 : vector<2x8x64xf32>
    %21 = arith.addf %14, %20 : vector<2x8x64xf32>
    %c0_22 = arith.constant 0 : index
    %c1 = arith.constant 1 : index
    %c0_23 = arith.constant 0 : index
    %22 = vector.load %arg10[%c0_22, %c1, %c0_23] : memref<2x38x64xf32, #tpu.memory_space<vmem>>, vector<2x8x64xf32>
    %23 = vector.extract_strided_slice %13 {offsets = [1, 0], sizes = [1, 64], strides = [1, 1]} : vector<31x64xf32> to vector<1x64xf32>
    %24 = vector.shape_cast %23 : vector<1x64xf32> to vector<64xf32>
    %25 = vector.shape_cast %24 : vector<64xf32> to vector<1x1x64xf32>
    %26 = vector.broadcast %25 : vector<1x1x64xf32> to vector<2x8x64xf32>
    %27 = arith.mulf %22, %26 : vector<2x8x64xf32>
    %28 = arith.addf %21, %27 : vector<2x8x64xf32>
    %c0_24 = arith.constant 0 : index
    %c2 = arith.constant 2 : index
    %c0_25 = arith.constant 0 : index
    %29 = vector.load %arg10[%c0_24, %c2, %c0_25] : memref<2x38x64xf32, #tpu.memory_space<vmem>>, vector<2x8x64xf32>
    %30 = vector.extract_strided_slice %13 {offsets = [2, 0], sizes = [1, 64], strides = [1, 1]} : vector<31x64xf32> to vector<1x64xf32>
    %31 = vector.shape_cast %30 : vector<1x64xf32> to vector<64xf32>
    %32 = vector.shape_cast %31 : vector<64xf32> to vector<1x1x64xf32>
    %33 = vector.broadcast %32 : vector<1x1x64xf32> to vector<2x8x64xf32>
    %34 = arith.mulf %29, %33 : vector<2x8x64xf32>
    %35 = arith.addf %28, %34 : vector<2x8x64xf32>
    %c0_26 = arith.constant 0 : index
    %c3 = arith.constant 3 : index
    %c0_27 = arith.constant 0 : index
    %36 = vector.load %arg10[%c0_26, %c3, %c0_27] : memref<2x38x64xf32, #tpu.memory_space<vmem>>, vector<2x8x64xf32>
    %37 = vector.extract_strided_slice %13 {offsets = [3, 0], sizes = [1, 64], strides = [1, 1]} : vector<31x64xf32> to vector<1x64xf32>
    %38 = vector.shape_cast %37 : vector<1x64xf32> to vector<64xf32>
    %39 = vector.shape_cast %38 : vector<64xf32> to vector<1x1x64xf32>
    %40 = vector.broadcast %39 : vector<1x1x64xf32> to vector<2x8x64xf32>
    %41 = arith.mulf %36, %40 : vector<2x8x64xf32>
    %42 = arith.addf %35, %41 : vector<2x8x64xf32>
    %c0_28 = arith.constant 0 : index
    %c4 = arith.constant 4 : index
    %c0_29 = arith.constant 0 : index
    %43 = vector.load %arg10[%c0_28, %c4, %c0_29] : memref<2x38x64xf32, #tpu.memory_space<vmem>>, vector<2x8x64xf32>
    %44 = vector.extract_strided_slice %13 {offsets = [4, 0], sizes = [1, 64], strides = [1, 1]} : vector<31x64xf32> to vector<1x64xf32>
    %45 = vector.shape_cast %44 : vector<1x64xf32> to vector<64xf32>
    %46 = vector.shape_cast %45 : vector<64xf32> to vector<1x1x64xf32>
    %47 = vector.broadcast %46 : vector<1x1x64xf32> to vector<2x8x64xf32>
    %48 = arith.mulf %43, %47 : vector<2x8x64xf32>
    %49 = arith.addf %42, %48 : vector<2x8x64xf32>
    %c0_30 = arith.constant 0 : index
    %c5 = arith.constant 5 : index
    %c0_31 = arith.constant 0 : index
    %50 = vector.load %arg10[%c0_30, %c5, %c0_31] : memref<2x38x64xf32, #tpu.memory_space<vmem>>, vector<2x8x64xf32>
    %51 = vector.extract_strided_slice %13 {offsets = [5, 0], sizes = [1, 64], strides = [1, 1]} : vector<31x64xf32> to vector<1x64xf32>
    %52 = vector.shape_cast %51 : vector<1x64xf32> to vector<64xf32>
    %53 = vector.shape_cast %52 : vector<64xf32> to vector<1x1x64xf32>
    %54 = vector.broadcast %53 : vector<1x1x64xf32> to vector<2x8x64xf32>
    %55 = arith.mulf %50, %54 : vector<2x8x64xf32>
    %56 = arith.addf %49, %55 : vector<2x8x64xf32>
    %c0_32 = arith.constant 0 : index
    %c6 = arith.constant 6 : index
    %c0_33 = arith.constant 0 : index
    %57 = vector.load %arg10[%c0_32, %c6, %c0_33] : memref<2x38x64xf32, #tpu.memory_space<vmem>>, vector<2x8x64xf32>
    %58 = vector.extract_strided_slice %13 {offsets = [6, 0], sizes = [1, 64], strides = [1, 1]} : vector<31x64xf32> to vector<1x64xf32>
    %59 = vector.shape_cast %58 : vector<1x64xf32> to vector<64xf32>
    %60 = vector.shape_cast %59 : vector<64xf32> to vector<1x1x64xf32>
    %61 = vector.broadcast %60 : vector<1x1x64xf32> to vector<2x8x64xf32>
    %62 = arith.mulf %57, %61 : vector<2x8x64xf32>
    %63 = arith.addf %56, %62 : vector<2x8x64xf32>
    %c0_34 = arith.constant 0 : index
    %c7 = arith.constant 7 : index
    %c0_35 = arith.constant 0 : index
    %64 = vector.load %arg10[%c0_34, %c7, %c0_35] : memref<2x38x64xf32, #tpu.memory_space<vmem>>, vector<2x8x64xf32>
    %65 = vector.extract_strided_slice %13 {offsets = [7, 0], sizes = [1, 64], strides = [1, 1]} : vector<31x64xf32> to vector<1x64xf32>
    %66 = vector.shape_cast %65 : vector<1x64xf32> to vector<64xf32>
    %67 = vector.shape_cast %66 : vector<64xf32> to vector<1x1x64xf32>
    %68 = vector.broadcast %67 : vector<1x1x64xf32> to vector<2x8x64xf32>
    %69 = arith.mulf %64, %68 : vector<2x8x64xf32>
    %70 = arith.addf %63, %69 : vector<2x8x64xf32>
    %c0_36 = arith.constant 0 : index
    %c8 = arith.constant 8 : index
    %c0_37 = arith.constant 0 : index
    %71 = vector.load %arg10[%c0_36, %c8, %c0_37] : memref<2x38x64xf32, #tpu.memory_space<vmem>>, vector<2x8x64xf32>
    %72 = vector.extract_strided_slice %13 {offsets = [8, 0], sizes = [1, 64], strides = [1, 1]} : vector<31x64xf32> to vector<1x64xf32>
    %73 = vector.shape_cast %72 : vector<1x64xf32> to vector<64xf32>
    %74 = vector.shape_cast %73 : vector<64xf32> to vector<1x1x64xf32>
    %75 = vector.broadcast %74 : vector<1x1x64xf32> to vector<2x8x64xf32>
    %76 = arith.mulf %71, %75 : vector<2x8x64xf32>
    %77 = arith.addf %70, %76 : vector<2x8x64xf32>
    %c0_38 = arith.constant 0 : index
    %c9 = arith.constant 9 : index
    %c0_39 = arith.constant 0 : index
    %78 = vector.load %arg10[%c0_38, %c9, %c0_39] : memref<2x38x64xf32, #tpu.memory_space<vmem>>, vector<2x8x64xf32>
    %79 = vector.extract_strided_slice %13 {offsets = [9, 0], sizes = [1, 64], strides = [1, 1]} : vector<31x64xf32> to vector<1x64xf32>
    %80 = vector.shape_cast %79 : vector<1x64xf32> to vector<64xf32>
    %81 = vector.shape_cast %80 : vector<64xf32> to vector<1x1x64xf32>
    %82 = vector.broadcast %81 : vector<1x1x64xf32> to vector<2x8x64xf32>
    %83 = arith.mulf %78, %82 : vector<2x8x64xf32>
    %84 = arith.addf %77, %83 : vector<2x8x64xf32>
    %c0_40 = arith.constant 0 : index
    %c10 = arith.constant 10 : index
    %c0_41 = arith.constant 0 : index
    %85 = vector.load %arg10[%c0_40, %c10, %c0_41] : memref<2x38x64xf32, #tpu.memory_space<vmem>>, vector<2x8x64xf32>
    %86 = vector.extract_strided_slice %13 {offsets = [10, 0], sizes = [1, 64], strides = [1, 1]} : vector<31x64xf32> to vector<1x64xf32>
    %87 = vector.shape_cast %86 : vector<1x64xf32> to vector<64xf32>
    %88 = vector.shape_cast %87 : vector<64xf32> to vector<1x1x64xf32>
    %89 = vector.broadcast %88 : vector<1x1x64xf32> to vector<2x8x64xf32>
    %90 = arith.mulf %85, %89 : vector<2x8x64xf32>
    %91 = arith.addf %84, %90 : vector<2x8x64xf32>
    %c0_42 = arith.constant 0 : index
    %c11 = arith.constant 11 : index
    %c0_43 = arith.constant 0 : index
    %92 = vector.load %arg10[%c0_42, %c11, %c0_43] : memref<2x38x64xf32, #tpu.memory_space<vmem>>, vector<2x8x64xf32>
    %93 = vector.extract_strided_slice %13 {offsets = [11, 0], sizes = [1, 64], strides = [1, 1]} : vector<31x64xf32> to vector<1x64xf32>
    %94 = vector.shape_cast %93 : vector<1x64xf32> to vector<64xf32>
    %95 = vector.shape_cast %94 : vector<64xf32> to vector<1x1x64xf32>
    %96 = vector.broadcast %95 : vector<1x1x64xf32> to vector<2x8x64xf32>
    %97 = arith.mulf %92, %96 : vector<2x8x64xf32>
    %98 = arith.addf %91, %97 : vector<2x8x64xf32>
    %c0_44 = arith.constant 0 : index
    %c12 = arith.constant 12 : index
    %c0_45 = arith.constant 0 : index
    %99 = vector.load %arg10[%c0_44, %c12, %c0_45] : memref<2x38x64xf32, #tpu.memory_space<vmem>>, vector<2x8x64xf32>
    %100 = vector.extract_strided_slice %13 {offsets = [12, 0], sizes = [1, 64], strides = [1, 1]} : vector<31x64xf32> to vector<1x64xf32>
    %101 = vector.shape_cast %100 : vector<1x64xf32> to vector<64xf32>
    %102 = vector.shape_cast %101 : vector<64xf32> to vector<1x1x64xf32>
    %103 = vector.broadcast %102 : vector<1x1x64xf32> to vector<2x8x64xf32>
    %104 = arith.mulf %99, %103 : vector<2x8x64xf32>
    %105 = arith.addf %98, %104 : vector<2x8x64xf32>
    %c0_46 = arith.constant 0 : index
    %c13 = arith.constant 13 : index
    %c0_47 = arith.constant 0 : index
    %106 = vector.load %arg10[%c0_46, %c13, %c0_47] : memref<2x38x64xf32, #tpu.memory_space<vmem>>, vector<2x8x64xf32>
    %107 = vector.extract_strided_slice %13 {offsets = [13, 0], sizes = [1, 64], strides = [1, 1]} : vector<31x64xf32> to vector<1x64xf32>
    %108 = vector.shape_cast %107 : vector<1x64xf32> to vector<64xf32>
    %109 = vector.shape_cast %108 : vector<64xf32> to vector<1x1x64xf32>
    %110 = vector.broadcast %109 : vector<1x1x64xf32> to vector<2x8x64xf32>
    %111 = arith.mulf %106, %110 : vector<2x8x64xf32>
    %112 = arith.addf %105, %111 : vector<2x8x64xf32>
    %c0_48 = arith.constant 0 : index
    %c14 = arith.constant 14 : index
    %c0_49 = arith.constant 0 : index
    %113 = vector.load %arg10[%c0_48, %c14, %c0_49] : memref<2x38x64xf32, #tpu.memory_space<vmem>>, vector<2x8x64xf32>
    %114 = vector.extract_strided_slice %13 {offsets = [14, 0], sizes = [1, 64], strides = [1, 1]} : vector<31x64xf32> to vector<1x64xf32>
    %115 = vector.shape_cast %114 : vector<1x64xf32> to vector<64xf32>
    %116 = vector.shape_cast %115 : vector<64xf32> to vector<1x1x64xf32>
    %117 = vector.broadcast %116 : vector<1x1x64xf32> to vector<2x8x64xf32>
    %118 = arith.mulf %113, %117 : vector<2x8x64xf32>
    %119 = arith.addf %112, %118 : vector<2x8x64xf32>
    %c0_50 = arith.constant 0 : index
    %c15_51 = arith.constant 15 : index
    %c0_52 = arith.constant 0 : index
    %120 = vector.load %arg10[%c0_50, %c15_51, %c0_52] : memref<2x38x64xf32, #tpu.memory_space<vmem>>, vector<2x8x64xf32>
    %121 = vector.extract_strided_slice %13 {offsets = [15, 0], sizes = [1, 64], strides = [1, 1]} : vector<31x64xf32> to vector<1x64xf32>
    %122 = vector.shape_cast %121 : vector<1x64xf32> to vector<64xf32>
    %123 = vector.shape_cast %122 : vector<64xf32> to vector<1x1x64xf32>
    %124 = vector.broadcast %123 : vector<1x1x64xf32> to vector<2x8x64xf32>
    %125 = arith.mulf %120, %124 : vector<2x8x64xf32>
    %126 = arith.addf %119, %125 : vector<2x8x64xf32>
    %c0_53 = arith.constant 0 : index
    %c16 = arith.constant 16 : index
    %c0_54 = arith.constant 0 : index
    %127 = vector.load %arg10[%c0_53, %c16, %c0_54] : memref<2x38x64xf32, #tpu.memory_space<vmem>>, vector<2x8x64xf32>
    %128 = vector.extract_strided_slice %13 {offsets = [16, 0], sizes = [1, 64], strides = [1, 1]} : vector<31x64xf32> to vector<1x64xf32>
    %129 = vector.shape_cast %128 : vector<1x64xf32> to vector<64xf32>
    %130 = vector.shape_cast %129 : vector<64xf32> to vector<1x1x64xf32>
    %131 = vector.broadcast %130 : vector<1x1x64xf32> to vector<2x8x64xf32>
    %132 = arith.mulf %127, %131 : vector<2x8x64xf32>
    %133 = arith.addf %126, %132 : vector<2x8x64xf32>
    %c0_55 = arith.constant 0 : index
    %c17 = arith.constant 17 : index
    %c0_56 = arith.constant 0 : index
    %134 = vector.load %arg10[%c0_55, %c17, %c0_56] : memref<2x38x64xf32, #tpu.memory_space<vmem>>, vector<2x8x64xf32>
    %135 = vector.extract_strided_slice %13 {offsets = [17, 0], sizes = [1, 64], strides = [1, 1]} : vector<31x64xf32> to vector<1x64xf32>
    %136 = vector.shape_cast %135 : vector<1x64xf32> to vector<64xf32>
    %137 = vector.shape_cast %136 : vector<64xf32> to vector<1x1x64xf32>
    %138 = vector.broadcast %137 : vector<1x1x64xf32> to vector<2x8x64xf32>
    %139 = arith.mulf %134, %138 : vector<2x8x64xf32>
    %140 = arith.addf %133, %139 : vector<2x8x64xf32>
    %c0_57 = arith.constant 0 : index
    %c18 = arith.constant 18 : index
    %c0_58 = arith.constant 0 : index
    %141 = vector.load %arg10[%c0_57, %c18, %c0_58] : memref<2x38x64xf32, #tpu.memory_space<vmem>>, vector<2x8x64xf32>
    %142 = vector.extract_strided_slice %13 {offsets = [18, 0], sizes = [1, 64], strides = [1, 1]} : vector<31x64xf32> to vector<1x64xf32>
    %143 = vector.shape_cast %142 : vector<1x64xf32> to vector<64xf32>
    %144 = vector.shape_cast %143 : vector<64xf32> to vector<1x1x64xf32>
    %145 = vector.broadcast %144 : vector<1x1x64xf32> to vector<2x8x64xf32>
    %146 = arith.mulf %141, %145 : vector<2x8x64xf32>
    %147 = arith.addf %140, %146 : vector<2x8x64xf32>
    %c0_59 = arith.constant 0 : index
    %c19 = arith.constant 19 : index
    %c0_60 = arith.constant 0 : index
    %148 = vector.load %arg10[%c0_59, %c19, %c0_60] : memref<2x38x64xf32, #tpu.memory_space<vmem>>, vector<2x8x64xf32>
    %149 = vector.extract_strided_slice %13 {offsets = [19, 0], sizes = [1, 64], strides = [1, 1]} : vector<31x64xf32> to vector<1x64xf32>
    %150 = vector.shape_cast %149 : vector<1x64xf32> to vector<64xf32>
    %151 = vector.shape_cast %150 : vector<64xf32> to vector<1x1x64xf32>
    %152 = vector.broadcast %151 : vector<1x1x64xf32> to vector<2x8x64xf32>
    %153 = arith.mulf %148, %152 : vector<2x8x64xf32>
    %154 = arith.addf %147, %153 : vector<2x8x64xf32>
    %c0_61 = arith.constant 0 : index
    %c20 = arith.constant 20 : index
    %c0_62 = arith.constant 0 : index
    %155 = vector.load %arg10[%c0_61, %c20, %c0_62] : memref<2x38x64xf32, #tpu.memory_space<vmem>>, vector<2x8x64xf32>
    %156 = vector.extract_strided_slice %13 {offsets = [20, 0], sizes = [1, 64], strides = [1, 1]} : vector<31x64xf32> to vector<1x64xf32>
    %157 = vector.shape_cast %156 : vector<1x64xf32> to vector<64xf32>
    %158 = vector.shape_cast %157 : vector<64xf32> to vector<1x1x64xf32>
    %159 = vector.broadcast %158 : vector<1x1x64xf32> to vector<2x8x64xf32>
    %160 = arith.mulf %155, %159 : vector<2x8x64xf32>
    %161 = arith.addf %154, %160 : vector<2x8x64xf32>
    %c0_63 = arith.constant 0 : index
    %c21 = arith.constant 21 : index
    %c0_64 = arith.constant 0 : index
    %162 = vector.load %arg10[%c0_63, %c21, %c0_64] : memref<2x38x64xf32, #tpu.memory_space<vmem>>, vector<2x8x64xf32>
    %163 = vector.extract_strided_slice %13 {offsets = [21, 0], sizes = [1, 64], strides = [1, 1]} : vector<31x64xf32> to vector<1x64xf32>
    %164 = vector.shape_cast %163 : vector<1x64xf32> to vector<64xf32>
    %165 = vector.shape_cast %164 : vector<64xf32> to vector<1x1x64xf32>
    %166 = vector.broadcast %165 : vector<1x1x64xf32> to vector<2x8x64xf32>
    %167 = arith.mulf %162, %166 : vector<2x8x64xf32>
    %168 = arith.addf %161, %167 : vector<2x8x64xf32>
    %c0_65 = arith.constant 0 : index
    %c22 = arith.constant 22 : index
    %c0_66 = arith.constant 0 : index
    %169 = vector.load %arg10[%c0_65, %c22, %c0_66] : memref<2x38x64xf32, #tpu.memory_space<vmem>>, vector<2x8x64xf32>
    %170 = vector.extract_strided_slice %13 {offsets = [22, 0], sizes = [1, 64], strides = [1, 1]} : vector<31x64xf32> to vector<1x64xf32>
    %171 = vector.shape_cast %170 : vector<1x64xf32> to vector<64xf32>
    %172 = vector.shape_cast %171 : vector<64xf32> to vector<1x1x64xf32>
    %173 = vector.broadcast %172 : vector<1x1x64xf32> to vector<2x8x64xf32>
    %174 = arith.mulf %169, %173 : vector<2x8x64xf32>
    %175 = arith.addf %168, %174 : vector<2x8x64xf32>
    %c0_67 = arith.constant 0 : index
    %c23_68 = arith.constant 23 : index
    %c0_69 = arith.constant 0 : index
    %176 = vector.load %arg10[%c0_67, %c23_68, %c0_69] : memref<2x38x64xf32, #tpu.memory_space<vmem>>, vector<2x8x64xf32>
    %177 = vector.extract_strided_slice %13 {offsets = [23, 0], sizes = [1, 64], strides = [1, 1]} : vector<31x64xf32> to vector<1x64xf32>
    %178 = vector.shape_cast %177 : vector<1x64xf32> to vector<64xf32>
    %179 = vector.shape_cast %178 : vector<64xf32> to vector<1x1x64xf32>
    %180 = vector.broadcast %179 : vector<1x1x64xf32> to vector<2x8x64xf32>
    %181 = arith.mulf %176, %180 : vector<2x8x64xf32>
    %182 = arith.addf %175, %181 : vector<2x8x64xf32>
    %c0_70 = arith.constant 0 : index
    %c24 = arith.constant 24 : index
    %c0_71 = arith.constant 0 : index
    %183 = vector.load %arg10[%c0_70, %c24, %c0_71] : memref<2x38x64xf32, #tpu.memory_space<vmem>>, vector<2x8x64xf32>
    %184 = vector.extract_strided_slice %13 {offsets = [24, 0], sizes = [1, 64], strides = [1, 1]} : vector<31x64xf32> to vector<1x64xf32>
    %185 = vector.shape_cast %184 : vector<1x64xf32> to vector<64xf32>
    %186 = vector.shape_cast %185 : vector<64xf32> to vector<1x1x64xf32>
    %187 = vector.broadcast %186 : vector<1x1x64xf32> to vector<2x8x64xf32>
    %188 = arith.mulf %183, %187 : vector<2x8x64xf32>
    %189 = arith.addf %182, %188 : vector<2x8x64xf32>
    %c0_72 = arith.constant 0 : index
    %c25 = arith.constant 25 : index
    %c0_73 = arith.constant 0 : index
    %190 = vector.load %arg10[%c0_72, %c25, %c0_73] : memref<2x38x64xf32, #tpu.memory_space<vmem>>, vector<2x8x64xf32>
    %191 = vector.extract_strided_slice %13 {offsets = [25, 0], sizes = [1, 64], strides = [1, 1]} : vector<31x64xf32> to vector<1x64xf32>
    %192 = vector.shape_cast %191 : vector<1x64xf32> to vector<64xf32>
    %193 = vector.shape_cast %192 : vector<64xf32> to vector<1x1x64xf32>
    %194 = vector.broadcast %193 : vector<1x1x64xf32> to vector<2x8x64xf32>
    %195 = arith.mulf %190, %194 : vector<2x8x64xf32>
    %196 = arith.addf %189, %195 : vector<2x8x64xf32>
    %c0_74 = arith.constant 0 : index
    %c26 = arith.constant 26 : index
    %c0_75 = arith.constant 0 : index
    %197 = vector.load %arg10[%c0_74, %c26, %c0_75] : memref<2x38x64xf32, #tpu.memory_space<vmem>>, vector<2x8x64xf32>
    %198 = vector.extract_strided_slice %13 {offsets = [26, 0], sizes = [1, 64], strides = [1, 1]} : vector<31x64xf32> to vector<1x64xf32>
    %199 = vector.shape_cast %198 : vector<1x64xf32> to vector<64xf32>
    %200 = vector.shape_cast %199 : vector<64xf32> to vector<1x1x64xf32>
    %201 = vector.broadcast %200 : vector<1x1x64xf32> to vector<2x8x64xf32>
    %202 = arith.mulf %197, %201 : vector<2x8x64xf32>
    %203 = arith.addf %196, %202 : vector<2x8x64xf32>
    %c0_76 = arith.constant 0 : index
    %c27 = arith.constant 27 : index
    %c0_77 = arith.constant 0 : index
    %204 = vector.load %arg10[%c0_76, %c27, %c0_77] : memref<2x38x64xf32, #tpu.memory_space<vmem>>, vector<2x8x64xf32>
    %205 = vector.extract_strided_slice %13 {offsets = [27, 0], sizes = [1, 64], strides = [1, 1]} : vector<31x64xf32> to vector<1x64xf32>
    %206 = vector.shape_cast %205 : vector<1x64xf32> to vector<64xf32>
    %207 = vector.shape_cast %206 : vector<64xf32> to vector<1x1x64xf32>
    %208 = vector.broadcast %207 : vector<1x1x64xf32> to vector<2x8x64xf32>
    %209 = arith.mulf %204, %208 : vector<2x8x64xf32>
    %210 = arith.addf %203, %209 : vector<2x8x64xf32>
    %c0_78 = arith.constant 0 : index
    %c28 = arith.constant 28 : index
    %c0_79 = arith.constant 0 : index
    %211 = vector.load %arg10[%c0_78, %c28, %c0_79] : memref<2x38x64xf32, #tpu.memory_space<vmem>>, vector<2x8x64xf32>
    %212 = vector.extract_strided_slice %13 {offsets = [28, 0], sizes = [1, 64], strides = [1, 1]} : vector<31x64xf32> to vector<1x64xf32>
    %213 = vector.shape_cast %212 : vector<1x64xf32> to vector<64xf32>
    %214 = vector.shape_cast %213 : vector<64xf32> to vector<1x1x64xf32>
    %215 = vector.broadcast %214 : vector<1x1x64xf32> to vector<2x8x64xf32>
    %216 = arith.mulf %211, %215 : vector<2x8x64xf32>
    %217 = arith.addf %210, %216 : vector<2x8x64xf32>
    %c0_80 = arith.constant 0 : index
    %c29 = arith.constant 29 : index
    %c0_81 = arith.constant 0 : index
    %218 = vector.load %arg10[%c0_80, %c29, %c0_81] : memref<2x38x64xf32, #tpu.memory_space<vmem>>, vector<2x8x64xf32>
    %219 = vector.extract_strided_slice %13 {offsets = [29, 0], sizes = [1, 64], strides = [1, 1]} : vector<31x64xf32> to vector<1x64xf32>
    %220 = vector.shape_cast %219 : vector<1x64xf32> to vector<64xf32>
    %221 = vector.shape_cast %220 : vector<64xf32> to vector<1x1x64xf32>
    %222 = vector.broadcast %221 : vector<1x1x64xf32> to vector<2x8x64xf32>
    %223 = arith.mulf %218, %222 : vector<2x8x64xf32>
    %224 = arith.addf %217, %223 : vector<2x8x64xf32>
    %c0_82 = arith.constant 0 : index
    %c30 = arith.constant 30 : index
    %c0_83 = arith.constant 0 : index
    %225 = vector.load %arg10[%c0_82, %c30, %c0_83] : memref<2x38x64xf32, #tpu.memory_space<vmem>>, vector<2x8x64xf32>
    %226 = vector.extract_strided_slice %13 {offsets = [30, 0], sizes = [1, 64], strides = [1, 1]} : vector<31x64xf32> to vector<1x64xf32>
    %227 = vector.shape_cast %226 : vector<1x64xf32> to vector<64xf32>
    %228 = vector.shape_cast %227 : vector<64xf32> to vector<1x1x64xf32>
    %229 = vector.broadcast %228 : vector<1x1x64xf32> to vector<2x8x64xf32>
    %230 = arith.mulf %225, %229 : vector<2x8x64xf32>
    %231 = arith.addf %224, %230 : vector<2x8x64xf32>
    %232 = vector.extract_strided_slice %231 {offsets = [0, 0, 0], sizes = [2, 8, 32], strides = [1, 1, 1]} : vector<2x8x64xf32> to vector<2x8x32xf32>
    %233 = vector.extract_strided_slice %231 {offsets = [0, 0, 32], sizes = [2, 8, 32], strides = [1, 1, 1]} : vector<2x8x64xf32> to vector<2x8x32xf32>
    %234 = arith.addf %232, %233 : vector<2x8x32xf32>
    %c0_84 = arith.constant 0 : index
    %c0_85 = arith.constant 0 : index
    %235 = vector.load %arg6[%c0_84, %c0_85] : memref<1x32xf32, #tpu.memory_space<vmem>>, vector<1x32xf32>
    %236 = vector.shape_cast %235 : vector<1x32xf32> to vector<1x1x32xf32>
    %237 = vector.broadcast %236 : vector<1x1x32xf32> to vector<2x8x32xf32>
    %238 = arith.addf %234, %237 : vector<2x8x32xf32>
    %cst_86 = arith.constant 2.000000e+01 : f32
    %239 = vector.broadcast %cst_86 : f32 to vector<2x8x32xf32>
    %240 = arith.minimumf %238, %239 : vector<2x8x32xf32>
    %241 = math.exp %240 : vector<2x8x32xf32>
    %cst_87 = arith.constant 1.000000e+00 : f32
    %242 = vector.broadcast %cst_87 : f32 to vector<2x8x32xf32>
    %243 = arith.addf %242, %241 : vector<2x8x32xf32>
    %cst_88 = arith.constant 1.000000e+00 : f32
    %244 = vector.broadcast %cst_88 : f32 to vector<2x8x32xf32>
    %245 = arith.addf %244, %241 : vector<2x8x32xf32>
    %246 = arith.mulf %243, %245 : vector<2x8x32xf32>
    %cst_89 = arith.constant 1.000000e+00 : f32
    %247 = vector.broadcast %cst_89 : f32 to vector<2x8x32xf32>
    %248 = arith.subf %246, %247 : vector<2x8x32xf32>
    %249 = arith.mulf %238, %248 : vector<2x8x32xf32>
    %cst_90 = arith.constant 1.000000e+00 : f32
    %250 = vector.broadcast %cst_90 : f32 to vector<2x8x32xf32>
    %251 = arith.addf %246, %250 : vector<2x8x32xf32>
    %252 = tpu.reciprocal %251 {approx = true} : vector<2x8x32xf32> -> vector<2x8x32xf32>
    %253 = arith.mulf %249, %252 : vector<2x8x32xf32>
    %254 = vector.shape_cast %253 : vector<2x8x32xf32> to vector<16x32xf32>
    %cst_91 = arith.constant dense<0.000000e+00> : vector<16x64xf32>
    %255 = tpu.matmul %254, %3, %cst_91 {dimension_numbers = #tpu.dot_dimension_numbers<[1], [0], [0], [1], [0, 0, 1, 1], [], []>} : vector<16x32xf32>, vector<32x64xf32>, vector<16x64xf32> -> vector<16x64xf32>
    %256 = vector.shape_cast %255 : vector<16x64xf32> to vector<2x8x64xf32>
    %c0_92 = arith.constant 0 : index
    %c15_93 = arith.constant 15 : index
    %c0_94 = arith.constant 0 : index
    %257 = vector.load %arg10[%c0_92, %c15_93, %c0_94] : memref<2x38x64xf32, #tpu.memory_space<vmem>>, vector<2x8x64xf32>
    tpu.vector_store %arg10[%c0_92, %c15_93, %c0_94], %256 {strides = array<i32>} : memref<2x38x64xf32, #tpu.memory_space<vmem>>, vector<2x8x64xf32>,
    %c0_95 = arith.constant 0 : index
    %c0_96 = arith.constant 0 : index
    %258 = vector.load %arg7[%c0_95, %c0_96] : memref<31x64xf32, #tpu.memory_space<vmem>>, vector<31x64xf32>
    %cst_97 = arith.constant 0.000000e+00 : f32
    %259 = vector.broadcast %cst_97 : f32 to vector<2x8x64xf32>
    %c0_98 = arith.constant 0 : index
    %c0_99 = arith.constant 0 : index
    %c0_100 = arith.constant 0 : index
    %260 = vector.load %arg10[%c0_98, %c0_99, %c0_100] : memref<2x38x64xf32, #tpu.memory_space<vmem>>, vector<2x8x64xf32>
    %261 = vector.extract_strided_slice %258 {offsets = [0, 0], sizes = [1, 64], strides = [1, 1]} : vector<31x64xf32> to vector<1x64xf32>
    %262 = vector.shape_cast %261 : vector<1x64xf32> to vector<64xf32>
    %263 = vector.shape_cast %262 : vector<64xf32> to vector<1x1x64xf32>
    %264 = vector.broadcast %263 : vector<1x1x64xf32> to vector<2x8x64xf32>
    %265 = arith.mulf %260, %264 : vector<2x8x64xf32>
    %266 = arith.addf %259, %265 : vector<2x8x64xf32>
    %c0_101 = arith.constant 0 : index
    %c1_102 = arith.constant 1 : index
    %c0_103 = arith.constant 0 : index
    %267 = vector.load %arg10[%c0_101, %c1_102, %c0_103] : memref<2x38x64xf32, #tpu.memory_space<vmem>>, vector<2x8x64xf32>
    %268 = vector.extract_strided_slice %258 {offsets = [1, 0], sizes = [1, 64], strides = [1, 1]} : vector<31x64xf32> to vector<1x64xf32>
    %269 = vector.shape_cast %268 : vector<1x64xf32> to vector<64xf32>
    %270 = vector.shape_cast %269 : vector<64xf32> to vector<1x1x64xf32>
    %271 = vector.broadcast %270 : vector<1x1x64xf32> to vector<2x8x64xf32>
    %272 = arith.mulf %267, %271 : vector<2x8x64xf32>
    %273 = arith.addf %266, %272 : vector<2x8x64xf32>
    %c0_104 = arith.constant 0 : index
    %c2_105 = arith.constant 2 : index
    %c0_106 = arith.constant 0 : index
    %274 = vector.load %arg10[%c0_104, %c2_105, %c0_106] : memref<2x38x64xf32, #tpu.memory_space<vmem>>, vector<2x8x64xf32>
    %275 = vector.extract_strided_slice %258 {offsets = [2, 0], sizes = [1, 64], strides = [1, 1]} : vector<31x64xf32> to vector<1x64xf32>
    %276 = vector.shape_cast %275 : vector<1x64xf32> to vector<64xf32>
    %277 = vector.shape_cast %276 : vector<64xf32> to vector<1x1x64xf32>
    %278 = vector.broadcast %277 : vector<1x1x64xf32> to vector<2x8x64xf32>
    %279 = arith.mulf %274, %278 : vector<2x8x64xf32>
    %280 = arith.addf %273, %279 : vector<2x8x64xf32>
    %c0_107 = arith.constant 0 : index
    %c3_108 = arith.constant 3 : index
    %c0_109 = arith.constant 0 : index
    %281 = vector.load %arg10[%c0_107, %c3_108, %c0_109] : memref<2x38x64xf32, #tpu.memory_space<vmem>>, vector<2x8x64xf32>
    %282 = vector.extract_strided_slice %258 {offsets = [3, 0], sizes = [1, 64], strides = [1, 1]} : vector<31x64xf32> to vector<1x64xf32>
    %283 = vector.shape_cast %282 : vector<1x64xf32> to vector<64xf32>
    %284 = vector.shape_cast %283 : vector<64xf32> to vector<1x1x64xf32>
    %285 = vector.broadcast %284 : vector<1x1x64xf32> to vector<2x8x64xf32>
    %286 = arith.mulf %281, %285 : vector<2x8x64xf32>
    %287 = arith.addf %280, %286 : vector<2x8x64xf32>
    %c0_110 = arith.constant 0 : index
    %c4_111 = arith.constant 4 : index
    %c0_112 = arith.constant 0 : index
    %288 = vector.load %arg10[%c0_110, %c4_111, %c0_112] : memref<2x38x64xf32, #tpu.memory_space<vmem>>, vector<2x8x64xf32>
    %289 = vector.extract_strided_slice %258 {offsets = [4, 0], sizes = [1, 64], strides = [1, 1]} : vector<31x64xf32> to vector<1x64xf32>
    %290 = vector.shape_cast %289 : vector<1x64xf32> to vector<64xf32>
    %291 = vector.shape_cast %290 : vector<64xf32> to vector<1x1x64xf32>
    %292 = vector.broadcast %291 : vector<1x1x64xf32> to vector<2x8x64xf32>
    %293 = arith.mulf %288, %292 : vector<2x8x64xf32>
    %294 = arith.addf %287, %293 : vector<2x8x64xf32>
    %c0_113 = arith.constant 0 : index
    %c5_114 = arith.constant 5 : index
    %c0_115 = arith.constant 0 : index
    %295 = vector.load %arg10[%c0_113, %c5_114, %c0_115] : memref<2x38x64xf32, #tpu.memory_space<vmem>>, vector<2x8x64xf32>
    %296 = vector.extract_strided_slice %258 {offsets = [5, 0], sizes = [1, 64], strides = [1, 1]} : vector<31x64xf32> to vector<1x64xf32>
    %297 = vector.shape_cast %296 : vector<1x64xf32> to vector<64xf32>
    %298 = vector.shape_cast %297 : vector<64xf32> to vector<1x1x64xf32>
    %299 = vector.broadcast %298 : vector<1x1x64xf32> to vector<2x8x64xf32>
    %300 = arith.mulf %295, %299 : vector<2x8x64xf32>
    %301 = arith.addf %294, %300 : vector<2x8x64xf32>
    %c0_116 = arith.constant 0 : index
    %c6_117 = arith.constant 6 : index
    %c0_118 = arith.constant 0 : index
    %302 = vector.load %arg10[%c0_116, %c6_117, %c0_118] : memref<2x38x64xf32, #tpu.memory_space<vmem>>, vector<2x8x64xf32>
    %303 = vector.extract_strided_slice %258 {offsets = [6, 0], sizes = [1, 64], strides = [1, 1]} : vector<31x64xf32> to vector<1x64xf32>
    %304 = vector.shape_cast %303 : vector<1x64xf32> to vector<64xf32>
    %305 = vector.shape_cast %304 : vector<64xf32> to vector<1x1x64xf32>
    %306 = vector.broadcast %305 : vector<1x1x64xf32> to vector<2x8x64xf32>
    %307 = arith.mulf %302, %306 : vector<2x8x64xf32>
    %308 = arith.addf %301, %307 : vector<2x8x64xf32>
    %c0_119 = arith.constant 0 : index
    %c7_120 = arith.constant 7 : index
    %c0_121 = arith.constant 0 : index
    %309 = vector.load %arg10[%c0_119, %c7_120, %c0_121] : memref<2x38x64xf32, #tpu.memory_space<vmem>>, vector<2x8x64xf32>
    %310 = vector.extract_strided_slice %258 {offsets = [7, 0], sizes = [1, 64], strides = [1, 1]} : vector<31x64xf32> to vector<1x64xf32>
    %311 = vector.shape_cast %310 : vector<1x64xf32> to vector<64xf32>
    %312 = vector.shape_cast %311 : vector<64xf32> to vector<1x1x64xf32>
    %313 = vector.broadcast %312 : vector<1x1x64xf32> to vector<2x8x64xf32>
    %314 = arith.mulf %309, %313 : vector<2x8x64xf32>
    %315 = arith.addf %308, %314 : vector<2x8x64xf32>
    %c0_122 = arith.constant 0 : index
    %c8_123 = arith.constant 8 : index
    %c0_124 = arith.constant 0 : index
    %316 = vector.load %arg10[%c0_122, %c8_123, %c0_124] : memref<2x38x64xf32, #tpu.memory_space<vmem>>, vector<2x8x64xf32>
    %317 = vector.extract_strided_slice %258 {offsets = [8, 0], sizes = [1, 64], strides = [1, 1]} : vector<31x64xf32> to vector<1x64xf32>
    %318 = vector.shape_cast %317 : vector<1x64xf32> to vector<64xf32>
    %319 = vector.shape_cast %318 : vector<64xf32> to vector<1x1x64xf32>
    %320 = vector.broadcast %319 : vector<1x1x64xf32> to vector<2x8x64xf32>
    %321 = arith.mulf %316, %320 : vector<2x8x64xf32>
    %322 = arith.addf %315, %321 : vector<2x8x64xf32>
    %c0_125 = arith.constant 0 : index
    %c9_126 = arith.constant 9 : index
    %c0_127 = arith.constant 0 : index
    %323 = vector.load %arg10[%c0_125, %c9_126, %c0_127] : memref<2x38x64xf32, #tpu.memory_space<vmem>>, vector<2x8x64xf32>
    %324 = vector.extract_strided_slice %258 {offsets = [9, 0], sizes = [1, 64], strides = [1, 1]} : vector<31x64xf32> to vector<1x64xf32>
    %325 = vector.shape_cast %324 : vector<1x64xf32> to vector<64xf32>
    %326 = vector.shape_cast %325 : vector<64xf32> to vector<1x1x64xf32>
    %327 = vector.broadcast %326 : vector<1x1x64xf32> to vector<2x8x64xf32>
    %328 = arith.mulf %323, %327 : vector<2x8x64xf32>
    %329 = arith.addf %322, %328 : vector<2x8x64xf32>
    %c0_128 = arith.constant 0 : index
    %c10_129 = arith.constant 10 : index
    %c0_130 = arith.constant 0 : index
    %330 = vector.load %arg10[%c0_128, %c10_129, %c0_130] : memref<2x38x64xf32, #tpu.memory_space<vmem>>, vector<2x8x64xf32>
    %331 = vector.extract_strided_slice %258 {offsets = [10, 0], sizes = [1, 64], strides = [1, 1]} : vector<31x64xf32> to vector<1x64xf32>
    %332 = vector.shape_cast %331 : vector<1x64xf32> to vector<64xf32>
    %333 = vector.shape_cast %332 : vector<64xf32> to vector<1x1x64xf32>
    %334 = vector.broadcast %333 : vector<1x1x64xf32> to vector<2x8x64xf32>
    %335 = arith.mulf %330, %334 : vector<2x8x64xf32>
    %336 = arith.addf %329, %335 : vector<2x8x64xf32>
    %c0_131 = arith.constant 0 : index
    %c11_132 = arith.constant 11 : index
    %c0_133 = arith.constant 0 : index
    %337 = vector.load %arg10[%c0_131, %c11_132, %c0_133] : memref<2x38x64xf32, #tpu.memory_space<vmem>>, vector<2x8x64xf32>
    %338 = vector.extract_strided_slice %258 {offsets = [11, 0], sizes = [1, 64], strides = [1, 1]} : vector<31x64xf32> to vector<1x64xf32>
    %339 = vector.shape_cast %338 : vector<1x64xf32> to vector<64xf32>
    %340 = vector.shape_cast %339 : vector<64xf32> to vector<1x1x64xf32>
    %341 = vector.broadcast %340 : vector<1x1x64xf32> to vector<2x8x64xf32>
    %342 = arith.mulf %337, %341 : vector<2x8x64xf32>
    %343 = arith.addf %336, %342 : vector<2x8x64xf32>
    %c0_134 = arith.constant 0 : index
    %c12_135 = arith.constant 12 : index
    %c0_136 = arith.constant 0 : index
    %344 = vector.load %arg10[%c0_134, %c12_135, %c0_136] : memref<2x38x64xf32, #tpu.memory_space<vmem>>, vector<2x8x64xf32>
    %345 = vector.extract_strided_slice %258 {offsets = [12, 0], sizes = [1, 64], strides = [1, 1]} : vector<31x64xf32> to vector<1x64xf32>
    %346 = vector.shape_cast %345 : vector<1x64xf32> to vector<64xf32>
    %347 = vector.shape_cast %346 : vector<64xf32> to vector<1x1x64xf32>
    %348 = vector.broadcast %347 : vector<1x1x64xf32> to vector<2x8x64xf32>
    %349 = arith.mulf %344, %348 : vector<2x8x64xf32>
    %350 = arith.addf %343, %349 : vector<2x8x64xf32>
    %c0_137 = arith.constant 0 : index
    %c13_138 = arith.constant 13 : index
    %c0_139 = arith.constant 0 : index
    %351 = vector.load %arg10[%c0_137, %c13_138, %c0_139] : memref<2x38x64xf32, #tpu.memory_space<vmem>>, vector<2x8x64xf32>
    %352 = vector.extract_strided_slice %258 {offsets = [13, 0], sizes = [1, 64], strides = [1, 1]} : vector<31x64xf32> to vector<1x64xf32>
    %353 = vector.shape_cast %352 : vector<1x64xf32> to vector<64xf32>
    %354 = vector.shape_cast %353 : vector<64xf32> to vector<1x1x64xf32>
    %355 = vector.broadcast %354 : vector<1x1x64xf32> to vector<2x8x64xf32>
    %356 = arith.mulf %351, %355 : vector<2x8x64xf32>
    %357 = arith.addf %350, %356 : vector<2x8x64xf32>
    %c0_140 = arith.constant 0 : index
    %c14_141 = arith.constant 14 : index
    %c0_142 = arith.constant 0 : index
    %358 = vector.load %arg10[%c0_140, %c14_141, %c0_142] : memref<2x38x64xf32, #tpu.memory_space<vmem>>, vector<2x8x64xf32>
    %359 = vector.extract_strided_slice %258 {offsets = [14, 0], sizes = [1, 64], strides = [1, 1]} : vector<31x64xf32> to vector<1x64xf32>
    %360 = vector.shape_cast %359 : vector<1x64xf32> to vector<64xf32>
    %361 = vector.shape_cast %360 : vector<64xf32> to vector<1x1x64xf32>
    %362 = vector.broadcast %361 : vector<1x1x64xf32> to vector<2x8x64xf32>
    %363 = arith.mulf %358, %362 : vector<2x8x64xf32>
    %364 = arith.addf %357, %363 : vector<2x8x64xf32>
    %c0_143 = arith.constant 0 : index
    %c15_144 = arith.constant 15 : index
    %c0_145 = arith.constant 0 : index
    %365 = vector.load %arg10[%c0_143, %c15_144, %c0_145] : memref<2x38x64xf32, #tpu.memory_space<vmem>>, vector<2x8x64xf32>
    %366 = vector.extract_strided_slice %258 {offsets = [15, 0], sizes = [1, 64], strides = [1, 1]} : vector<31x64xf32> to vector<1x64xf32>
    %367 = vector.shape_cast %366 : vector<1x64xf32> to vector<64xf32>
    %368 = vector.shape_cast %367 : vector<64xf32> to vector<1x1x64xf32>
    %369 = vector.broadcast %368 : vector<1x1x64xf32> to vector<2x8x64xf32>
    %370 = arith.mulf %365, %369 : vector<2x8x64xf32>
    %371 = arith.addf %364, %370 : vector<2x8x64xf32>
    %c0_146 = arith.constant 0 : index
    %c16_147 = arith.constant 16 : index
    %c0_148 = arith.constant 0 : index
    %372 = vector.load %arg10[%c0_146, %c16_147, %c0_148] : memref<2x38x64xf32, #tpu.memory_space<vmem>>, vector<2x8x64xf32>
    %373 = vector.extract_strided_slice %258 {offsets = [16, 0], sizes = [1, 64], strides = [1, 1]} : vector<31x64xf32> to vector<1x64xf32>
    %374 = vector.shape_cast %373 : vector<1x64xf32> to vector<64xf32>
    %375 = vector.shape_cast %374 : vector<64xf32> to vector<1x1x64xf32>
    %376 = vector.broadcast %375 : vector<1x1x64xf32> to vector<2x8x64xf32>
    %377 = arith.mulf %372, %376 : vector<2x8x64xf32>
    %378 = arith.addf %371, %377 : vector<2x8x64xf32>
    %c0_149 = arith.constant 0 : index
    %c17_150 = arith.constant 17 : index
    %c0_151 = arith.constant 0 : index
    %379 = vector.load %arg10[%c0_149, %c17_150, %c0_151] : memref<2x38x64xf32, #tpu.memory_space<vmem>>, vector<2x8x64xf32>
    %380 = vector.extract_strided_slice %258 {offsets = [17, 0], sizes = [1, 64], strides = [1, 1]} : vector<31x64xf32> to vector<1x64xf32>
    %381 = vector.shape_cast %380 : vector<1x64xf32> to vector<64xf32>
    %382 = vector.shape_cast %381 : vector<64xf32> to vector<1x1x64xf32>
    %383 = vector.broadcast %382 : vector<1x1x64xf32> to vector<2x8x64xf32>
    %384 = arith.mulf %379, %383 : vector<2x8x64xf32>
    %385 = arith.addf %378, %384 : vector<2x8x64xf32>
    %c0_152 = arith.constant 0 : index
    %c18_153 = arith.constant 18 : index
    %c0_154 = arith.constant 0 : index
    %386 = vector.load %arg10[%c0_152, %c18_153, %c0_154] : memref<2x38x64xf32, #tpu.memory_space<vmem>>, vector<2x8x64xf32>
    %387 = vector.extract_strided_slice %258 {offsets = [18, 0], sizes = [1, 64], strides = [1, 1]} : vector<31x64xf32> to vector<1x64xf32>
    %388 = vector.shape_cast %387 : vector<1x64xf32> to vector<64xf32>
    %389 = vector.shape_cast %388 : vector<64xf32> to vector<1x1x64xf32>
    %390 = vector.broadcast %389 : vector<1x1x64xf32> to vector<2x8x64xf32>
    %391 = arith.mulf %386, %390 : vector<2x8x64xf32>
    %392 = arith.addf %385, %391 : vector<2x8x64xf32>
    %c0_155 = arith.constant 0 : index
    %c19_156 = arith.constant 19 : index
    %c0_157 = arith.constant 0 : index
    %393 = vector.load %arg10[%c0_155, %c19_156, %c0_157] : memref<2x38x64xf32, #tpu.memory_space<vmem>>, vector<2x8x64xf32>
    %394 = vector.extract_strided_slice %258 {offsets = [19, 0], sizes = [1, 64], strides = [1, 1]} : vector<31x64xf32> to vector<1x64xf32>
    %395 = vector.shape_cast %394 : vector<1x64xf32> to vector<64xf32>
    %396 = vector.shape_cast %395 : vector<64xf32> to vector<1x1x64xf32>
    %397 = vector.broadcast %396 : vector<1x1x64xf32> to vector<2x8x64xf32>
    %398 = arith.mulf %393, %397 : vector<2x8x64xf32>
    %399 = arith.addf %392, %398 : vector<2x8x64xf32>
    %c0_158 = arith.constant 0 : index
    %c20_159 = arith.constant 20 : index
    %c0_160 = arith.constant 0 : index
    %400 = vector.load %arg10[%c0_158, %c20_159, %c0_160] : memref<2x38x64xf32, #tpu.memory_space<vmem>>, vector<2x8x64xf32>
    %401 = vector.extract_strided_slice %258 {offsets = [20, 0], sizes = [1, 64], strides = [1, 1]} : vector<31x64xf32> to vector<1x64xf32>
    %402 = vector.shape_cast %401 : vector<1x64xf32> to vector<64xf32>
    %403 = vector.shape_cast %402 : vector<64xf32> to vector<1x1x64xf32>
    %404 = vector.broadcast %403 : vector<1x1x64xf32> to vector<2x8x64xf32>
    %405 = arith.mulf %400, %404 : vector<2x8x64xf32>
    %406 = arith.addf %399, %405 : vector<2x8x64xf32>
    %c0_161 = arith.constant 0 : index
    %c21_162 = arith.constant 21 : index
    %c0_163 = arith.constant 0 : index
    %407 = vector.load %arg10[%c0_161, %c21_162, %c0_163] : memref<2x38x64xf32, #tpu.memory_space<vmem>>, vector<2x8x64xf32>
    %408 = vector.extract_strided_slice %258 {offsets = [21, 0], sizes = [1, 64], strides = [1, 1]} : vector<31x64xf32> to vector<1x64xf32>
    %409 = vector.shape_cast %408 : vector<1x64xf32> to vector<64xf32>
    %410 = vector.shape_cast %409 : vector<64xf32> to vector<1x1x64xf32>
    %411 = vector.broadcast %410 : vector<1x1x64xf32> to vector<2x8x64xf32>
    %412 = arith.mulf %407, %411 : vector<2x8x64xf32>
    %413 = arith.addf %406, %412 : vector<2x8x64xf32>
    %c0_164 = arith.constant 0 : index
    %c22_165 = arith.constant 22 : index
    %c0_166 = arith.constant 0 : index
    %414 = vector.load %arg10[%c0_164, %c22_165, %c0_166] : memref<2x38x64xf32, #tpu.memory_space<vmem>>, vector<2x8x64xf32>
    %415 = vector.extract_strided_slice %258 {offsets = [22, 0], sizes = [1, 64], strides = [1, 1]} : vector<31x64xf32> to vector<1x64xf32>
    %416 = vector.shape_cast %415 : vector<1x64xf32> to vector<64xf32>
    %417 = vector.shape_cast %416 : vector<64xf32> to vector<1x1x64xf32>
    %418 = vector.broadcast %417 : vector<1x1x64xf32> to vector<2x8x64xf32>
    %419 = arith.mulf %414, %418 : vector<2x8x64xf32>
    %420 = arith.addf %413, %419 : vector<2x8x64xf32>
    %c0_167 = arith.constant 0 : index
    %c23_168 = arith.constant 23 : index
    %c0_169 = arith.constant 0 : index
    %421 = vector.load %arg10[%c0_167, %c23_168, %c0_169] : memref<2x38x64xf32, #tpu.memory_space<vmem>>, vector<2x8x64xf32>
    %422 = vector.extract_strided_slice %258 {offsets = [23, 0], sizes = [1, 64], strides = [1, 1]} : vector<31x64xf32> to vector<1x64xf32>
    %423 = vector.shape_cast %422 : vector<1x64xf32> to vector<64xf32>
    %424 = vector.shape_cast %423 : vector<64xf32> to vector<1x1x64xf32>
    %425 = vector.broadcast %424 : vector<1x1x64xf32> to vector<2x8x64xf32>
    %426 = arith.mulf %421, %425 : vector<2x8x64xf32>
    %427 = arith.addf %420, %426 : vector<2x8x64xf32>
    %c0_170 = arith.constant 0 : index
    %c24_171 = arith.constant 24 : index
    %c0_172 = arith.constant 0 : index
    %428 = vector.load %arg10[%c0_170, %c24_171, %c0_172] : memref<2x38x64xf32, #tpu.memory_space<vmem>>, vector<2x8x64xf32>
    %429 = vector.extract_strided_slice %258 {offsets = [24, 0], sizes = [1, 64], strides = [1, 1]} : vector<31x64xf32> to vector<1x64xf32>
    %430 = vector.shape_cast %429 : vector<1x64xf32> to vector<64xf32>
    %431 = vector.shape_cast %430 : vector<64xf32> to vector<1x1x64xf32>
    %432 = vector.broadcast %431 : vector<1x1x64xf32> to vector<2x8x64xf32>
    %433 = arith.mulf %428, %432 : vector<2x8x64xf32>
    %434 = arith.addf %427, %433 : vector<2x8x64xf32>
    %c0_173 = arith.constant 0 : index
    %c25_174 = arith.constant 25 : index
    %c0_175 = arith.constant 0 : index
    %435 = vector.load %arg10[%c0_173, %c25_174, %c0_175] : memref<2x38x64xf32, #tpu.memory_space<vmem>>, vector<2x8x64xf32>
    %436 = vector.extract_strided_slice %258 {offsets = [25, 0], sizes = [1, 64], strides = [1, 1]} : vector<31x64xf32> to vector<1x64xf32>
    %437 = vector.shape_cast %436 : vector<1x64xf32> to vector<64xf32>
    %438 = vector.shape_cast %437 : vector<64xf32> to vector<1x1x64xf32>
    %439 = vector.broadcast %438 : vector<1x1x64xf32> to vector<2x8x64xf32>
    %440 = arith.mulf %435, %439 : vector<2x8x64xf32>
    %441 = arith.addf %434, %440 : vector<2x8x64xf32>
    %c0_176 = arith.constant 0 : index
    %c26_177 = arith.constant 26 : index
    %c0_178 = arith.constant 0 : index
    %442 = vector.load %arg10[%c0_176, %c26_177, %c0_178] : memref<2x38x64xf32, #tpu.memory_space<vmem>>, vector<2x8x64xf32>
    %443 = vector.extract_strided_slice %258 {offsets = [26, 0], sizes = [1, 64], strides = [1, 1]} : vector<31x64xf32> to vector<1x64xf32>
    %444 = vector.shape_cast %443 : vector<1x64xf32> to vector<64xf32>
    %445 = vector.shape_cast %444 : vector<64xf32> to vector<1x1x64xf32>
    %446 = vector.broadcast %445 : vector<1x1x64xf32> to vector<2x8x64xf32>
    %447 = arith.mulf %442, %446 : vector<2x8x64xf32>
    %448 = arith.addf %441, %447 : vector<2x8x64xf32>
    %c0_179 = arith.constant 0 : index
    %c27_180 = arith.constant 27 : index
    %c0_181 = arith.constant 0 : index
    %449 = vector.load %arg10[%c0_179, %c27_180, %c0_181] : memref<2x38x64xf32, #tpu.memory_space<vmem>>, vector<2x8x64xf32>
    %450 = vector.extract_strided_slice %258 {offsets = [27, 0], sizes = [1, 64], strides = [1, 1]} : vector<31x64xf32> to vector<1x64xf32>
    %451 = vector.shape_cast %450 : vector<1x64xf32> to vector<64xf32>
    %452 = vector.shape_cast %451 : vector<64xf32> to vector<1x1x64xf32>
    %453 = vector.broadcast %452 : vector<1x1x64xf32> to vector<2x8x64xf32>
    %454 = arith.mulf %449, %453 : vector<2x8x64xf32>
    %455 = arith.addf %448, %454 : vector<2x8x64xf32>
    %c0_182 = arith.constant 0 : index
    %c28_183 = arith.constant 28 : index
    %c0_184 = arith.constant 0 : index
    %456 = vector.load %arg10[%c0_182, %c28_183, %c0_184] : memref<2x38x64xf32, #tpu.memory_space<vmem>>, vector<2x8x64xf32>
    %457 = vector.extract_strided_slice %258 {offsets = [28, 0], sizes = [1, 64], strides = [1, 1]} : vector<31x64xf32> to vector<1x64xf32>
    %458 = vector.shape_cast %457 : vector<1x64xf32> to vector<64xf32>
    %459 = vector.shape_cast %458 : vector<64xf32> to vector<1x1x64xf32>
    %460 = vector.broadcast %459 : vector<1x1x64xf32> to vector<2x8x64xf32>
    %461 = arith.mulf %456, %460 : vector<2x8x64xf32>
    %462 = arith.addf %455, %461 : vector<2x8x64xf32>
    %c0_185 = arith.constant 0 : index
    %c29_186 = arith.constant 29 : index
    %c0_187 = arith.constant 0 : index
    %463 = vector.load %arg10[%c0_185, %c29_186, %c0_187] : memref<2x38x64xf32, #tpu.memory_space<vmem>>, vector<2x8x64xf32>
    %464 = vector.extract_strided_slice %258 {offsets = [29, 0], sizes = [1, 64], strides = [1, 1]} : vector<31x64xf32> to vector<1x64xf32>
    %465 = vector.shape_cast %464 : vector<1x64xf32> to vector<64xf32>
    %466 = vector.shape_cast %465 : vector<64xf32> to vector<1x1x64xf32>
    %467 = vector.broadcast %466 : vector<1x1x64xf32> to vector<2x8x64xf32>
    %468 = arith.mulf %463, %467 : vector<2x8x64xf32>
    %469 = arith.addf %462, %468 : vector<2x8x64xf32>
    %c0_188 = arith.constant 0 : index
    %c30_189 = arith.constant 30 : index
    %c0_190 = arith.constant 0 : index
    %470 = vector.load %arg10[%c0_188, %c30_189, %c0_190] : memref<2x38x64xf32, #tpu.memory_space<vmem>>, vector<2x8x64xf32>
    %471 = vector.extract_strided_slice %258 {offsets = [30, 0], sizes = [1, 64], strides = [1, 1]} : vector<31x64xf32> to vector<1x64xf32>
    %472 = vector.shape_cast %471 : vector<1x64xf32> to vector<64xf32>
    %473 = vector.shape_cast %472 : vector<64xf32> to vector<1x1x64xf32>
    %474 = vector.broadcast %473 : vector<1x1x64xf32> to vector<2x8x64xf32>
    %475 = arith.mulf %470, %474 : vector<2x8x64xf32>
    %476 = arith.addf %469, %475 : vector<2x8x64xf32>
    %477 = vector.extract_strided_slice %476 {offsets = [0, 0, 0], sizes = [2, 8, 32], strides = [1, 1, 1]} : vector<2x8x64xf32> to vector<2x8x32xf32>
    %478 = vector.extract_strided_slice %476 {offsets = [0, 0, 32], sizes = [2, 8, 32], strides = [1, 1, 1]} : vector<2x8x64xf32> to vector<2x8x32xf32>
    %479 = arith.addf %477, %478 : vector<2x8x32xf32>
    %c0_191 = arith.constant 0 : index
    %c0_192 = arith.constant 0 : index
    %480 = vector.load %arg8[%c0_191, %c0_192] : memref<1x32xf32, #tpu.memory_space<vmem>>, vector<1x32xf32>
    %481 = vector.shape_cast %480 : vector<1x32xf32> to vector<1x1x32xf32>
    %482 = vector.broadcast %481 : vector<1x1x32xf32> to vector<2x8x32xf32>
    %483 = arith.addf %479, %482 : vector<2x8x32xf32>
    %cst_193 = arith.constant 2.000000e+01 : f32
    %484 = vector.broadcast %cst_193 : f32 to vector<2x8x32xf32>
    %485 = arith.minimumf %483, %484 : vector<2x8x32xf32>
    %486 = math.exp %485 : vector<2x8x32xf32>
    %cst_194 = arith.constant 1.000000e+00 : f32
    %487 = vector.broadcast %cst_194 : f32 to vector<2x8x32xf32>
    %488 = arith.addf %487, %486 : vector<2x8x32xf32>
    %cst_195 = arith.constant 1.000000e+00 : f32
    %489 = vector.broadcast %cst_195 : f32 to vector<2x8x32xf32>
    %490 = arith.addf %489, %486 : vector<2x8x32xf32>
    %491 = arith.mulf %488, %490 : vector<2x8x32xf32>
    %cst_196 = arith.constant 1.000000e+00 : f32
    %492 = vector.broadcast %cst_196 : f32 to vector<2x8x32xf32>
    %493 = arith.subf %491, %492 : vector<2x8x32xf32>
    %494 = arith.mulf %483, %493 : vector<2x8x32xf32>
    %cst_197 = arith.constant 1.000000e+00 : f32
    %495 = vector.broadcast %cst_197 : f32 to vector<2x8x32xf32>
    %496 = arith.addf %491, %495 : vector<2x8x32xf32>
    %497 = tpu.reciprocal %496 {approx = true} : vector<2x8x32xf32> -> vector<2x8x32xf32>
    %498 = arith.mulf %494, %497 : vector<2x8x32xf32>
    %499 = vector.shape_cast %498 : vector<2x8x32xf32> to vector<16x32xf32>
    %500 = arith.addf %499, %9 : vector<16x32xf32>
    %c0_198 = arith.constant 0 : index
    %c0_199 = arith.constant 0 : index
    %501 = vector.load %arg9[%c0_198, %c0_199] : memref<16x32xf32, #tpu.memory_space<vmem>>, vector<16x32xf32>
    tpu.vector_store %arg9[%c0_198, %c0_199], %500 {strides = array<i32>} : memref<16x32xf32, #tpu.memory_space<vmem>>, vector<16x32xf32>,
    return
  }
  func.func @transform_0(%arg0: i32) -> (i32, i32) {
    %c0_i32 = arith.constant 0 : i32
    %c0_i32_0 = arith.constant 0 : i32
    %c0_i32_1 = arith.constant 0 : i32
    return %c0_i32, %c0_i32_0 : i32, i32
  }
  func.func @transform_1(%arg0: i32) -> (i32, i32) {
    %c0_i32 = arith.constant 0 : i32
    %c0_i32_0 = arith.constant 0 : i32
    %c0_i32_1 = arith.constant 0 : i32
    return %c0_i32, %c0_i32_0 : i32, i32
  }
  func.func @transform_2(%arg0: i32) -> (i32, i32) {
    %c0_i32 = arith.constant 0 : i32
    %c0_i32_0 = arith.constant 0 : i32
    %c0_i32_1 = arith.constant 0 : i32
    return %c0_i32, %c0_i32_0 : i32, i32
  }
  func.func @transform_3(%arg0: i32) -> (i32, i32) {
    %c0_i32 = arith.constant 0 : i32
    %c0_i32_0 = arith.constant 0 : i32
    %c0_i32_1 = arith.constant 0 : i32
    return %c0_i32, %c0_i32_0 : i32, i32
  }
  func.func @transform_4(%arg0: i32) -> (i32, i32) {
    %c0_i32 = arith.constant 0 : i32
    %c0_i32_0 = arith.constant 0 : i32
    %c0_i32_1 = arith.constant 0 : i32
    return %c0_i32, %c0_i32_0 : i32, i32
  }
  func.func @transform_5(%arg0: i32) -> (i32, i32) {
    %c0_i32 = arith.constant 0 : i32
    %c0_i32_0 = arith.constant 0 : i32
    %c0_i32_1 = arith.constant 0 : i32
    return %c0_i32, %c0_i32_0 : i32, i32
  }
  func.func @transform_6(%arg0: i32) -> (i32, i32) {
    %c0_i32 = arith.constant 0 : i32
    %c0_i32_0 = arith.constant 0 : i32
    %c0_i32_1 = arith.constant 0 : i32
    return %c0_i32, %c0_i32_0 : i32, i32
  }
  func.func @transform_7(%arg0: i32) -> (i32, i32) {
    %c0_i32 = arith.constant 0 : i32
    %c0_i32_0 = arith.constant 0 : i32
    %c0_i32_1 = arith.constant 0 : i32
    return %c0_i32, %c0_i32_0 : i32, i32
  }
  func.func @transform_8(%arg0: i32) -> (i32, i32) {
    %c0_i32 = arith.constant 0 : i32
    %c0_i32_0 = arith.constant 0 : i32
    %c0_i32_1 = arith.constant 0 : i32
    return %c0_i32, %c0_i32_0 : i32, i32
  }
}

</mosaic_0001>

<llo_original>
// kernel: tpu_custom_call.1
$region0: #{tpu_custom_call.1}
  #allocation0 [shape = 'u32[]', space=smem, size = 0x4, offset = 0x4, fixed_abs, tag = 'smem constant byte address 0x4 - core index']
  #allocation1 [shape = 'u32[72,128]{1,0:T(1,128)}', space=vmem, size = 0x9000, scoped, tag = 'internal scratch']
  #allocation2 [shape = 'f32[2,38,64]{2,1,0:T(8,128)}', space=vmem, size = 0xa000, scoped, tag = 'scratch operand']
  %s0 = inlined_call_operand.hbm [shape: f32[16,40], index: 0, kind: input, shape index: {}]
  %s1 = inlined_call_operand.vmem [shape: f32[40,32], index: 1, kind: input, shape index: {}]
  %s2 = inlined_call_operand.vmem [shape: f32[1,32], index: 2, kind: input, shape index: {}]
  %s3 = inlined_call_operand.vmem [shape: f32[32,64], index: 3, kind: input, shape index: {}]
  %s4 = inlined_call_operand.vmem [shape: f32[31,64], index: 4, kind: input, shape index: {}]
  %s5 = inlined_call_operand.vmem [shape: f32[1,32], index: 5, kind: input, shape index: {}]
  %s6 = inlined_call_operand.hbm [shape: f32[31,64], index: 6, kind: input, shape index: {}]
  %s7 = inlined_call_operand.vmem [shape: f32[1,32], index: 7, kind: input, shape index: {}]
  %s8 = inlined_call_operand.hbm [shape: f32[16,32], index: 8, kind: output, shape index: {}]
  %s9 = sld [smem:[#allocation0]]
  $region50: #{tpu_custom_call.1} parent=0
    _
  %s11 = ssub.s32 1, %s9
  %s12 = scalar_select 0, %s11, %s9
  $region1: #{tpu_custom_call.1} parent=0
    #allocation3 [shape = 'u8[8192]{0}', space=vmem, size = 0x2000, scoped, tag = 'input window, operand 0, single buffered']
    #allocation4 [shape = 's32[1]{0}', space=sflag, size = 0x4, scoped, tag = 'scoped memory for tpu_custom_call.1']
    #allocation5 [shape = 's32[1]{0}', space=sflag, size = 0x4, scoped, tag = 'scoped memory for tpu_custom_call.1']
    #allocation6 [shape = 'u8[16384]{0}', space=vmem, size = 0x4000, scoped, tag = 'input window, operand 6, single buffered']
    #allocation7 [shape = 's32[1]{0}', space=sflag, size = 0x4, scoped, tag = 'scoped memory for tpu_custom_call.1']
    #allocation8 [shape = 'u8[8192]{0}', space=vmem, size = 0x2000, scoped, tag = 'output window, operand 0, single buffered']
    %13 = vsyncpa [#allocation4], 0
    %14 = vsyncpa [#allocation7], 0
    %15 = vsyncpa [#allocation5], 0
    // Predicated region
    $region2: #{tpu_custom_call.1} parent=1 // pred_check
      _
    $region3: #{tpu_custom_call.1} parent=1 // pred_check_branch
      %17 = sbr.rel (0) target = $region5
    $region4: #{tpu_custom_call.1} parent=1 // pred_region
      %19 = vsyncadd [#allocation4], 0
      %s20 = sshll.u32 %s0, 4
      %s21 = int_to_ptr.hbm [resolvable:$true] %s20
      %s22 = sshll.u32 [#allocation3], 4
      %s23 = int_to_ptr.vmem [resolvable:$true] %s22
      %28 = dma.hbm_to_vmem [thread:$0]  %s21, 256, %s23, [#allocation4], 128, 128, 8
    $region5: #{tpu_custom_call.1} parent=1 // pred_fallthru
      _
    // Predicated region
    $region6: #{tpu_custom_call.1} parent=1 // pred_check
      _
    $region7: #{tpu_custom_call.1} parent=1 // pred_check_branch
      %30 = sbr.rel (0) target = $region9
    $region8: #{tpu_custom_call.1} parent=1 // pred_region
      _
    $region9: #{tpu_custom_call.1} parent=1 // pred_fallthru
      _
    // Predicated region
    $region10: #{tpu_custom_call.1} parent=1 // pred_check
      _
    $region11: #{tpu_custom_call.1} parent=1 // pred_check_branch
      %32 = sbr.rel (0) target = $region13
    $region12: #{tpu_custom_call.1} parent=1 // pred_region
      _
    $region13: #{tpu_custom_call.1} parent=1 // pred_fallthru
      _
    // Predicated region
    $region14: #{tpu_custom_call.1} parent=1 // pred_check
      _
    $region15: #{tpu_custom_call.1} parent=1 // pred_check_branch
      %34 = sbr.rel (0) target = $region17
    $region16: #{tpu_custom_call.1} parent=1 // pred_region
      _
    $region17: #{tpu_custom_call.1} parent=1 // pred_fallthru
      _
    // Predicated region
    $region18: #{tpu_custom_call.1} parent=1 // pred_check
      _
    $region19: #{tpu_custom_call.1} parent=1 // pred_check_branch
      %36 = sbr.rel (0) target = $region21
    $region20: #{tpu_custom_call.1} parent=1 // pred_region
      _
    $region21: #{tpu_custom_call.1} parent=1 // pred_fallthru
      _
    // Predicated region
    $region22: #{tpu_custom_call.1} parent=1 // pred_check
      _
    $region23: #{tpu_custom_call.1} parent=1 // pred_check_branch
      %38 = sbr.rel (0) target = $region25
    $region24: #{tpu_custom_call.1} parent=1 // pred_region
      _
    $region25: #{tpu_custom_call.1} parent=1 // pred_fallthru
      _
    // Predicated region
    $region26: #{tpu_custom_call.1} parent=1 // pred_check
      _
    $region27: #{tpu_custom_call.1} parent=1 // pred_check_branch
      %40 = sbr.rel (0) target = $region29
    $region28: #{tpu_custom_call.1} parent=1 // pred_region
      %42 = vsyncadd [#allocation7], 0
      %s43 = sshll.u32 %s6, 4
      %s44 = int_to_ptr.hbm [resolvable:$true] %s43
      %s45 = sshll.u32 [#allocation6], 4
      %s46 = int_to_ptr.vmem [resolvable:$true] %s45
      %51 = dma.hbm_to_vmem [thread:$0]  %s44, 512, %s46, [#allocation7], 128, 128, 8
    $region29: #{tpu_custom_call.1} parent=1 // pred_fallthru
      _
    // Predicated region
    $region30: #{tpu_custom_call.1} parent=1 // pred_check
      _
    $region31: #{tpu_custom_call.1} parent=1 // pred_check_branch
      %53 = sbr.rel (0) target = $region33
    $region32: #{tpu_custom_call.1} parent=1 // pred_region
      _
    $region33: #{tpu_custom_call.1} parent=1 // pred_fallthru
      _
    // Predicated region
    $region34: #{tpu_custom_call.1} parent=1 // pred_check
      _
    $region35: #{tpu_custom_call.1} parent=1 // pred_check_branch
      %55 = sbr.rel (0) target = $region37
    $region36: #{tpu_custom_call.1} parent=1 // pred_region
      %57 = dma.done [#allocation4], 256
    $region37: #{tpu_custom_call.1} parent=1 // pred_fallthru
      _
    // Predicated region
    $region38: #{tpu_custom_call.1} parent=1 // pred_check
      _
    $region39: #{tpu_custom_call.1} parent=1 // pred_check_branch
      %59 = sbr.rel (0) target = $region41
    $region40: #{tpu_custom_call.1} parent=1 // pred_region
      %61 = dma.done [#allocation7], 512
    $region41: #{tpu_custom_call.1} parent=1 // pred_fallthru
      _
    %vm62 = vcmask 523264
    %63 = vst.msk [vmem:[#allocation2] sm:$0xff] %vm62, 0.0
    %vm64 = vcmask 522240
    %65 = vst.msk [vmem:[#allocation2 + $0x8] sm:$0x7f] %vm64, 0.0
    %66 = vst.msk [vmem:[#allocation2 + $0x28] sm:$0xff] %vm62, 0.0
    %67 = vst.msk [vmem:[#allocation2 + $0x30] sm:$0x7f] %vm64, 0.0
    %68 = vst.msk [vmem:[#allocation2 + $0x17] sm:$0xff] %vm62, 0.0
    %69 = vst.msk [vmem:[#allocation2 + $0x1f] sm:$0x7f] %vm64, 0.0
    %70 = vst.msk [vmem:[#allocation2 + $0x3f] sm:$0xff] %vm62, 0.0
    %71 = vst.msk [vmem:[#allocation2 + $0x47] sm:$0x7f] %vm64, 0.0
    %v72 = vld [vmem:[%s3] sm:$0xff]
    %v73 = vld [vmem:[%s3 + $0x8] sm:$0xff]
    %v74 = vld [vmem:[%s3 + $0x10] sm:$0xff]
    %v75 = vld [vmem:[%s3 + $0x18] sm:$0xff]
    %v76 = vld [vmem:[#allocation3] sm:$0xff]
    %v77 = vld [vmem:[#allocation3 + $0x8] sm:$0xff]
    %v78 = vld [vmem:[%s1] sm:$0xff]
    %v79 = vld [vmem:[%s1 + $0x8] sm:$0xff]
    %v80 = vld [vmem:[%s1 + $0x10] sm:$0xff]
    %v81 = vld [vmem:[%s1 + $0x18] sm:$0xff]
    %v82 = vld [vmem:[%s1 + $0x20] sm:$0xff]
    %v83 = vld [vmem:[%s2] sm:$0x1]
    %v85 = vperm.slane %v83, 0
    %vm87 = vcmask 326656
    %v89 = vsel %vm87, %v76, 0
    %v92 = vsel %vm87, %v77, 0
    %94 = vmatpush.msra.mxu0 0.0
    %95 = vmatpush.msra.mxu0 0.0
    %96 = vmatpush.msra.mxu0 0.0
    %97 = vmatpush.msra.mxu0 0.0
    %98 = vmatpush.msra.mxu0 0.0
    %99 = vmatpush.msra.mxu0 0.0
    %100 = vmatpush.msra.mxu0 0.0
    %101 = vmatpush.msra.mxu0 0.0
    %102 = vmatpush.msra.mxu0 0.0
    %103 = vmatpush.msra.mxu0 0.0
    %104 = vmatpush.msra.mxu0 0.0
    %105 = vmatpush.msra.mxu0 %v82
    %106 = vmatpush.msra.mxu0 %v81
    %107 = vmatpush.msra.mxu0 %v80
    %108 = vmatpush.msra.mxu0 %v79
    %109 = vmatpush.msra.mxu0 %v78
    %110 = vmatmul.f32.gmra.mxu0 %v89
    %v111 = vpop.f32.mrf.mxu0
    %v112 = vadd.f32 %v85, %v111
    %113 = vmatmul.f32.gmra.mxu0 %v92
    %v114 = vpop.f32.mrf.mxu0
    %v115 = vadd.f32 %v85, %v114
    %116 = vdwg.mxu0
    %vm117 = vcmask 261120
    %v119 = vsel %vm117, %v112, 0
    %v122 = vsel %vm117, %v115, 0
    %124 = vmatpush.msra.mxu0 0.0
    %125 = vmatpush.msra.mxu0 0.0
    %126 = vmatpush.msra.mxu0 0.0
    %127 = vmatpush.msra.mxu0 0.0
    %128 = vmatpush.msra.mxu0 0.0
    %129 = vmatpush.msra.mxu0 0.0
    %130 = vmatpush.msra.mxu0 0.0
    %131 = vmatpush.msra.mxu0 0.0
    %132 = vmatpush.msra.mxu0 0.0
    %133 = vmatpush.msra.mxu0 0.0
    %134 = vmatpush.msra.mxu0 0.0
    %135 = vmatpush.msra.mxu0 0.0
    %136 = vmatpush.msra.mxu0 %v75
    %137 = vmatpush.msra.mxu0 %v74
    %138 = vmatpush.msra.mxu0 %v73
    %139 = vmatpush.msra.mxu0 %v72
    %140 = vmatmul.f32.gmra.mxu0 %v119
    %v141 = vpop.f32.mrf.mxu0
    %v142 = vadd.f32 0.0, %v141
    %143 = vmatmul.f32.gmra.mxu0 %v122
    %v144 = vpop.f32.mrf.mxu0
    %v145 = vadd.f32 0.0, %v144
    %146 = vdwg.mxu0
    %147 = vst.msk [vmem:[#allocation2 + $0xf] sm:$0xff] %vm62, %v142
    %148 = vst.msk [vmem:[#allocation2 + $0x37] sm:$0xff] %vm62, %v145
    %v149 = vld [vmem:[%s4] sm:$0xff]
    %v150 = vld [vmem:[%s4 + $0x8] sm:$0xff]
    %v151 = vld [vmem:[%s4 + $0x10] sm:$0xff]
    %v152 = vld [vmem:[%s4 + $0x18] sm:$0x7f]
    %v153 = vld [vmem:[#allocation2] sm:$0xff]
    %v154 = vld [vmem:[#allocation2 + $0x28] sm:$0xff]
    %v155 = vperm.slane %v149, 0
    %v156 = vmul.f32 %v153, %v155
    %v157 = vmul.f32 %v154, %v155
    %v158 = vadd.f32 %v156, 0.0
    %v159 = vadd.f32 %v157, 0.0
    %v160 = vld [vmem:[#allocation2 + $0x1] sm:$0xff]
    %v161 = vld [vmem:[#allocation2 + $0x29] sm:$0xff]
    %v162 = vperm.slane %v149, 1
    %v163 = vmul.f32 %v160, %v162
    %v164 = vmul.f32 %v161, %v162
    %v165 = vadd.f32 %v158, %v163
    %v166 = vadd.f32 %v159, %v164
    %v167 = vld [vmem:[#allocation2 + $0x2] sm:$0xff]
    %v168 = vld [vmem:[#allocation2 + $0x2a] sm:$0xff]
    %v169 = vperm.slane %v149, 2
    %v170 = vmul.f32 %v167, %v169
    %v171 = vmul.f32 %v168, %v169
    %v172 = vadd.f32 %v165, %v170
    %v173 = vadd.f32 %v166, %v171
    %v174 = vld [vmem:[#allocation2 + $0x3] sm:$0xff]
    %v175 = vld [vmem:[#allocation2 + $0x2b] sm:$0xff]
    %v176 = vperm.slane %v149, 3
    %v177 = vmul.f32 %v174, %v176
    %v178 = vmul.f32 %v175, %v176
    %v179 = vadd.f32 %v172, %v177
    %v180 = vadd.f32 %v173, %v178
    %v181 = vld [vmem:[#allocation2 + $0x4] sm:$0xff]
    %v182 = vld [vmem:[#allocation2 + $0x2c] sm:$0xff]
    %v183 = vperm.slane %v149, 4
    %v184 = vmul.f32 %v181, %v183
    %v185 = vmul.f32 %v182, %v183
    %v186 = vadd.f32 %v179, %v184
    %v187 = vadd.f32 %v180, %v185
    %v188 = vld [vmem:[#allocation2 + $0x5] sm:$0xff]
    %v189 = vld [vmem:[#allocation2 + $0x2d] sm:$0xff]
    %v190 = vperm.slane %v149, 5
    %v191 = vmul.f32 %v188, %v190
    %v192 = vmul.f32 %v189, %v190
    %v193 = vadd.f32 %v186, %v191
    %v194 = vadd.f32 %v187, %v192
    %v195 = vld [vmem:[#allocation2 + $0x6] sm:$0xff]
    %v196 = vld [vmem:[#allocation2 + $0x2e] sm:$0xff]
    %v197 = vperm.slane %v149, 6
    %v198 = vmul.f32 %v195, %v197
    %v199 = vmul.f32 %v196, %v197
    %v200 = vadd.f32 %v193, %v198
    %v201 = vadd.f32 %v194, %v199
    %v202 = vld [vmem:[#allocation2 + $0x7] sm:$0xff]
    %v203 = vld [vmem:[#allocation2 + $0x2f] sm:$0xff]
    %v204 = vperm.slane %v149, 7
    %v205 = vmul.f32 %v202, %v204
    %v206 = vmul.f32 %v203, %v204
    %v207 = vadd.f32 %v200, %v205
    %v208 = vadd.f32 %v201, %v206
    %v209 = vld [vmem:[#allocation2 + $0x8] sm:$0xff]
    %v210 = vld [vmem:[#allocation2 + $0x30] sm:$0xff]
    %v211 = vperm.slane %v150, 0
    %v212 = vmul.f32 %v209, %v211
    %v213 = vmul.f32 %v210, %v211
    %v214 = vadd.f32 %v207, %v212
    %v215 = vadd.f32 %v208, %v213
    %v216 = vld [vmem:[#allocation2 + $0x9] sm:$0xff]
    %v217 = vld [vmem:[#allocation2 + $0x31] sm:$0xff]
    %v218 = vperm.slane %v150, 1
    %v219 = vmul.f32 %v216, %v218
    %v220 = vmul.f32 %v217, %v218
    %v221 = vadd.f32 %v214, %v219
    %v222 = vadd.f32 %v215, %v220
    %v223 = vld [vmem:[#allocation2 + $0xa] sm:$0xff]
    %v224 = vld [vmem:[#allocation2 + $0x32] sm:$0xff]
    %v225 = vperm.slane %v150, 2
    %v226 = vmul.f32 %v223, %v225
    %v227 = vmul.f32 %v224, %v225
    %v228 = vadd.f32 %v221, %v226
    %v229 = vadd.f32 %v222, %v227
    %v230 = vld [vmem:[#allocation2 + $0xb] sm:$0xff]
    %v231 = vld [vmem:[#allocation2 + $0x33] sm:$0xff]
    %v232 = vperm.slane %v150, 3
    %v233 = vmul.f32 %v230, %v232
    %v234 = vmul.f32 %v231, %v232
    %v235 = vadd.f32 %v228, %v233
    %v236 = vadd.f32 %v229, %v234
    %v237 = vld [vmem:[#allocation2 + $0xc] sm:$0xff]
    %v238 = vld [vmem:[#allocation2 + $0x34] sm:$0xff]
    %v239 = vperm.slane %v150, 4
    %v240 = vmul.f32 %v237, %v239
    %v241 = vmul.f32 %v238, %v239
    %v242 = vadd.f32 %v235, %v240
    %v243 = vadd.f32 %v236, %v241
    %v244 = vld [vmem:[#allocation2 + $0xd] sm:$0xff]
    %v245 = vld [vmem:[#allocation2 + $0x35] sm:$0xff]
    %v246 = vperm.slane %v150, 5
    %v247 = vmul.f32 %v244, %v246
    %v248 = vmul.f32 %v245, %v246
    %v249 = vadd.f32 %v242, %v247
    %v250 = vadd.f32 %v243, %v248
    %v251 = vld [vmem:[#allocation2 + $0xe] sm:$0xff]
    %v252 = vld [vmem:[#allocation2 + $0x36] sm:$0xff]
    %v253 = vperm.slane %v150, 6
    %v254 = vmul.f32 %v251, %v253
    %v255 = vmul.f32 %v252, %v253
    %v256 = vadd.f32 %v249, %v254
    %v257 = vadd.f32 %v250, %v255
    %v258 = vld [vmem:[#allocation2 + $0xf] sm:$0xff]
    %v259 = vld [vmem:[#allocation2 + $0x37] sm:$0xff]
    %v260 = vperm.slane %v150, 7
    %v261 = vmul.f32 %v258, %v260
    %v262 = vmul.f32 %v259, %v260
    %v263 = vadd.f32 %v256, %v261
    %v264 = vadd.f32 %v257, %v262
    %v265 = vld [vmem:[#allocation2 + $0x10] sm:$0xff]
    %v266 = vld [vmem:[#allocation2 + $0x38] sm:$0xff]
    %v267 = vperm.slane %v151, 0
    %v268 = vmul.f32 %v265, %v267
    %v269 = vmul.f32 %v266, %v267
    %v270 = vadd.f32 %v263, %v268
    %v271 = vadd.f32 %v264, %v269
    %v272 = vld [vmem:[#allocation2 + $0x11] sm:$0xff]
    %v273 = vld [vmem:[#allocation2 + $0x39] sm:$0xff]
    %v274 = vperm.slane %v151, 1
    %v275 = vmul.f32 %v272, %v274
    %v276 = vmul.f32 %v273, %v274
    %v277 = vadd.f32 %v270, %v275
    %v278 = vadd.f32 %v271, %v276
    %v279 = vld [vmem:[#allocation2 + $0x12] sm:$0xff]
    %v280 = vld [vmem:[#allocation2 + $0x3a] sm:$0xff]
    %v281 = vperm.slane %v151, 2
    %v282 = vmul.f32 %v279, %v281
    %v283 = vmul.f32 %v280, %v281
    %v284 = vadd.f32 %v277, %v282
    %v285 = vadd.f32 %v278, %v283
    %v286 = vld [vmem:[#allocation2 + $0x13] sm:$0xff]
    %v287 = vld [vmem:[#allocation2 + $0x3b] sm:$0xff]
    %v288 = vperm.slane %v151, 3
    %v289 = vmul.f32 %v286, %v288
    %v290 = vmul.f32 %v287, %v288
    %v291 = vadd.f32 %v284, %v289
    %v292 = vadd.f32 %v285, %v290
    %v293 = vld [vmem:[#allocation2 + $0x14] sm:$0xff]
    %v294 = vld [vmem:[#allocation2 + $0x3c] sm:$0xff]
    %v295 = vperm.slane %v151, 4
    %v296 = vmul.f32 %v293, %v295
    %v297 = vmul.f32 %v294, %v295
    %v298 = vadd.f32 %v291, %v296
    %v299 = vadd.f32 %v292, %v297
    %v300 = vld [vmem:[#allocation2 + $0x15] sm:$0xff]
    %v301 = vld [vmem:[#allocation2 + $0x3d] sm:$0xff]
    %v302 = vperm.slane %v151, 5
    %v303 = vmul.f32 %v300, %v302
    %v304 = vmul.f32 %v301, %v302
    %v305 = vadd.f32 %v298, %v303
    %v306 = vadd.f32 %v299, %v304
    %v307 = vld [vmem:[#allocation2 + $0x16] sm:$0xff]
    %v308 = vld [vmem:[#allocation2 + $0x3e] sm:$0xff]
    %v309 = vperm.slane %v151, 6
    %v310 = vmul.f32 %v307, %v309
    %v311 = vmul.f32 %v308, %v309
    %v312 = vadd.f32 %v305, %v310
    %v313 = vadd.f32 %v306, %v311
    %v314 = vld [vmem:[#allocation2 + $0x17] sm:$0xff]
    %v315 = vld [vmem:[#allocation2 + $0x3f] sm:$0xff]
    %v316 = vperm.slane %v151, 7
    %v317 = vmul.f32 %v314, %v316
    %v318 = vmul.f32 %v315, %v316
    %v319 = vadd.f32 %v312, %v317
    %v320 = vadd.f32 %v313, %v318
    %v321 = vld [vmem:[#allocation2 + $0x18] sm:$0xff]
    %v322 = vld [vmem:[#allocation2 + $0x40] sm:$0xff]
    %v323 = vperm.slane %v152, 0
    %v324 = vmul.f32 %v321, %v323
    %v325 = vmul.f32 %v322, %v323
    %v326 = vadd.f32 %v319, %v324
    %v327 = vadd.f32 %v320, %v325
    %v328 = vld [vmem:[#allocation2 + $0x19] sm:$0xff]
    %v329 = vld [vmem:[#allocation2 + $0x41] sm:$0xff]
    %v330 = vperm.slane %v152, 1
    %v331 = vmul.f32 %v328, %v330
    %v332 = vmul.f32 %v329, %v330
    %v333 = vadd.f32 %v326, %v331
    %v334 = vadd.f32 %v327, %v332
    %v335 = vld [vmem:[#allocation2 + $0x1a] sm:$0xff]
    %v336 = vld [vmem:[#allocation2 + $0x42] sm:$0xff]
    %v337 = vperm.slane %v152, 2
    %v338 = vmul.f32 %v335, %v337
    %v339 = vmul.f32 %v336, %v337
    %v340 = vadd.f32 %v333, %v338
    %v341 = vadd.f32 %v334, %v339
    %v342 = vld [vmem:[#allocation2 + $0x1b] sm:$0xff]
    %v343 = vld [vmem:[#allocation2 + $0x43] sm:$0xff]
    %v344 = vperm.slane %v152, 3
    %v345 = vmul.f32 %v342, %v344
    %v346 = vmul.f32 %v343, %v344
    %v347 = vadd.f32 %v340, %v345
    %v348 = vadd.f32 %v341, %v346
    %v349 = vld [vmem:[#allocation2 + $0x1c] sm:$0xff]
    %v350 = vld [vmem:[#allocation2 + $0x44] sm:$0xff]
    %v351 = vperm.slane %v152, 4
    %v352 = vmul.f32 %v349, %v351
    %v353 = vmul.f32 %v350, %v351
    %v354 = vadd.f32 %v347, %v352
    %v355 = vadd.f32 %v348, %v353
    %v356 = vld [vmem:[#allocation2 + $0x1d] sm:$0xff]
    %v357 = vld [vmem:[#allocation2 + $0x45] sm:$0xff]
    %v358 = vperm.slane %v152, 5
    %v359 = vmul.f32 %v356, %v358
    %v360 = vmul.f32 %v357, %v358
    %v361 = vadd.f32 %v354, %v359
    %v362 = vadd.f32 %v355, %v360
    %v363 = vld [vmem:[#allocation2 + $0x1e] sm:$0xff]
    %v364 = vld [vmem:[#allocation2 + $0x46] sm:$0xff]
    %v365 = vperm.slane %v152, 6
    %v366 = vmul.f32 %v363, %v365
    %v367 = vmul.f32 %v364, %v365
    %v368 = vadd.f32 %v361, %v366
    %v369 = vadd.f32 %v362, %v367
    %372 = vrot.lane.b32.xlu0 %v368, 96
    %v373 = vpop.permute.xlu0 %372
    %374 = vrot.lane.b32.xlu0 %v369, 96
    %v375 = vpop.permute.xlu0 %374
    %v378 = vadd.f32 %v368, %v373
    %v379 = vadd.f32 %v369, %v375
    %v380 = vld [vmem:[%s5] sm:$0x1]
    %v382 = vperm.slane %v380, 0
    %v384 = vadd.f32 %v378, %v382
    %v385 = vadd.f32 %v379, %v382
    %v386 = vmin.f32 %v384, 20.0
    %v387 = vmin.f32 %v385, 20.0
    %v388 = vmul.f32 %v386, 1.442695
    %v389 = vpow.pop %v388
    %v390 = vmul.f32 %v387, 1.442695
    %v391 = vpow.pop %v390
    %v392 = vadd.f32 %v389, 1.0
    %v393 = vadd.f32 %v391, 1.0
    %v394 = vmul.f32 %v392, %v392
    %v395 = vmul.f32 %v393, %v393
    %v396 = vsub.f32 %v394, 1.0
    %v397 = vsub.f32 %v395, 1.0
    %v398 = vmul.f32 %v384, %v396
    %v399 = vmul.f32 %v385, %v397
    %v400 = vadd.f32 %v394, 1.0
    %v401 = vadd.f32 %v395, 1.0
    %v402 = vrcp.pop %v400
    %v403 = vrcp.pop %v401
    %v404 = vmul.f32 %v398, %v402
    %v405 = vmul.f32 %v399, %v403
    %v407 = vsel %vm117, %v404, 0
    %v410 = vsel %vm117, %v405, 0
    %412 = vmatpush.msra.mxu0 0.0
    %413 = vmatpush.msra.mxu0 0.0
    %414 = vmatpush.msra.mxu0 0.0
    %415 = vmatpush.msra.mxu0 0.0
    %416 = vmatpush.msra.mxu0 0.0
    %417 = vmatpush.msra.mxu0 0.0
    %418 = vmatpush.msra.mxu0 0.0
    %419 = vmatpush.msra.mxu0 0.0
    %420 = vmatpush.msra.mxu0 0.0
    %421 = vmatpush.msra.mxu0 0.0
    %422 = vmatpush.msra.mxu0 0.0
    %423 = vmatpush.msra.mxu0 0.0
    %424 = vmatpush.msra.mxu0 %v75
    %425 = vmatpush.msra.mxu0 %v74
    %426 = vmatpush.msra.mxu0 %v73
    %427 = vmatpush.msra.mxu0 %v72
    %428 = vmatmul.f32.gmra.mxu0 %v407
    %v429 = vpop.f32.mrf.mxu0
    %v430 = vadd.f32 0.0, %v429
    %431 = vmatmul.f32.gmra.mxu0 %v410
    %v432 = vpop.f32.mrf.mxu0
    %v433 = vadd.f32 0.0, %v432
    %434 = vdwg.mxu0
    %435 = vst.msk [vmem:[#allocation2 + $0xf] sm:$0xff] %vm62, %v430
    %436 = vst.msk [vmem:[#allocation2 + $0x37] sm:$0xff] %vm62, %v433
    %v437 = vld [vmem:[#allocation6] sm:$0xff]
    %v438 = vld [vmem:[#allocation6 + $0x8] sm:$0xff]
    %v439 = vld [vmem:[#allocation6 + $0x10] sm:$0xff]
    %v440 = vld [vmem:[#allocation6 + $0x18] sm:$0x7f]
    %v441 = vld [vmem:[#allocation2] sm:$0xff]
    %v442 = vld [vmem:[#allocation2 + $0x28] sm:$0xff]
    %v443 = vperm.slane %v437, 0
    %v444 = vmul.f32 %v441, %v443
    %v445 = vmul.f32 %v442, %v443
    %v446 = vadd.f32 %v444, 0.0
    %v447 = vadd.f32 %v445, 0.0
    %v448 = vld [vmem:[#allocation2 + $0x1] sm:$0xff]
    %v449 = vld [vmem:[#allocation2 + $0x29] sm:$0xff]
    %v450 = vperm.slane %v437, 1
    %v451 = vmul.f32 %v448, %v450
    %v452 = vmul.f32 %v449, %v450
    %v453 = vadd.f32 %v446, %v451
    %v454 = vadd.f32 %v447, %v452
    %v455 = vld [vmem:[#allocation2 + $0x2] sm:$0xff]
    %v456 = vld [vmem:[#allocation2 + $0x2a] sm:$0xff]
    %v457 = vperm.slane %v437, 2
    %v458 = vmul.f32 %v455, %v457
    %v459 = vmul.f32 %v456, %v457
    %v460 = vadd.f32 %v453, %v458
    %v461 = vadd.f32 %v454, %v459
    %v462 = vld [vmem:[#allocation2 + $0x3] sm:$0xff]
    %v463 = vld [vmem:[#allocation2 + $0x2b] sm:$0xff]
    %v464 = vperm.slane %v437, 3
    %v465 = vmul.f32 %v462, %v464
    %v466 = vmul.f32 %v463, %v464
    %v467 = vadd.f32 %v460, %v465
    %v468 = vadd.f32 %v461, %v466
    %v469 = vld [vmem:[#allocation2 + $0x4] sm:$0xff]
    %v470 = vld [vmem:[#allocation2 + $0x2c] sm:$0xff]
    %v471 = vperm.slane %v437, 4
    %v472 = vmul.f32 %v469, %v471
    %v473 = vmul.f32 %v470, %v471
    %v474 = vadd.f32 %v467, %v472
    %v475 = vadd.f32 %v468, %v473
    %v476 = vld [vmem:[#allocation2 + $0x5] sm:$0xff]
    %v477 = vld [vmem:[#allocation2 + $0x2d] sm:$0xff]
    %v478 = vperm.slane %v437, 5
    %v479 = vmul.f32 %v476, %v478
    %v480 = vmul.f32 %v477, %v478
    %v481 = vadd.f32 %v474, %v479
    %v482 = vadd.f32 %v475, %v480
    %v483 = vld [vmem:[#allocation2 + $0x6] sm:$0xff]
    %v484 = vld [vmem:[#allocation2 + $0x2e] sm:$0xff]
    %v485 = vperm.slane %v437, 6
    %v486 = vmul.f32 %v483, %v485
    %v487 = vmul.f32 %v484, %v485
    %v488 = vadd.f32 %v481, %v486
    %v489 = vadd.f32 %v482, %v487
    %v490 = vld [vmem:[#allocation2 + $0x7] sm:$0xff]
    %v491 = vld [vmem:[#allocation2 + $0x2f] sm:$0xff]
    %v492 = vperm.slane %v437, 7
    %v493 = vmul.f32 %v490, %v492
    %v494 = vmul.f32 %v491, %v492
    %v495 = vadd.f32 %v488, %v493
    %v496 = vadd.f32 %v489, %v494
    %v497 = vld [vmem:[#allocation2 + $0x8] sm:$0xff]
    %v498 = vld [vmem:[#allocation2 + $0x30] sm:$0xff]
    %v499 = vperm.slane %v438, 0
    %v500 = vmul.f32 %v497, %v499
    %v501 = vmul.f32 %v498, %v499
    %v502 = vadd.f32 %v495, %v500
    %v503 = vadd.f32 %v496, %v501
    %v504 = vld [vmem:[#allocation2 + $0x9] sm:$0xff]
    %v505 = vld [vmem:[#allocation2 + $0x31] sm:$0xff]
    %v506 = vperm.slane %v438, 1
    %v507 = vmul.f32 %v504, %v506
    %v508 = vmul.f32 %v505, %v506
    %v509 = vadd.f32 %v502, %v507
    %v510 = vadd.f32 %v503, %v508
    %v511 = vld [vmem:[#allocation2 + $0xa] sm:$0xff]
    %v512 = vld [vmem:[#allocation2 + $0x32] sm:$0xff]
    %v513 = vperm.slane %v438, 2
    %v514 = vmul.f32 %v511, %v513
    %v515 = vmul.f32 %v512, %v513
    %v516 = vadd.f32 %v509, %v514
    %v517 = vadd.f32 %v510, %v515
    %v518 = vld [vmem:[#allocation2 + $0xb] sm:$0xff]
    %v519 = vld [vmem:[#allocation2 + $0x33] sm:$0xff]
    %v520 = vperm.slane %v438, 3
    %v521 = vmul.f32 %v518, %v520
    %v522 = vmul.f32 %v519, %v520
    %v523 = vadd.f32 %v516, %v521
    %v524 = vadd.f32 %v517, %v522
    %v525 = vld [vmem:[#allocation2 + $0xc] sm:$0xff]
    %v526 = vld [vmem:[#allocation2 + $0x34] sm:$0xff]
    %v527 = vperm.slane %v438, 4
    %v528 = vmul.f32 %v525, %v527
    %v529 = vmul.f32 %v526, %v527
    %v530 = vadd.f32 %v523, %v528
    %v531 = vadd.f32 %v524, %v529
    %v532 = vld [vmem:[#allocation2 + $0xd] sm:$0xff]
    %v533 = vld [vmem:[#allocation2 + $0x35] sm:$0xff]
    %v534 = vperm.slane %v438, 5
    %v535 = vmul.f32 %v532, %v534
    %v536 = vmul.f32 %v533, %v534
    %v537 = vadd.f32 %v530, %v535
    %v538 = vadd.f32 %v531, %v536
    %v539 = vld [vmem:[#allocation2 + $0xe] sm:$0xff]
    %v540 = vld [vmem:[#allocation2 + $0x36] sm:$0xff]
    %v541 = vperm.slane %v438, 6
    %v542 = vmul.f32 %v539, %v541
    %v543 = vmul.f32 %v540, %v541
    %v544 = vadd.f32 %v537, %v542
    %v545 = vadd.f32 %v538, %v543
    %v546 = vld [vmem:[#allocation2 + $0xf] sm:$0xff]
    %v547 = vld [vmem:[#allocation2 + $0x37] sm:$0xff]
    %v548 = vperm.slane %v438, 7
    %v549 = vmul.f32 %v546, %v548
    %v550 = vmul.f32 %v547, %v548
    %v551 = vadd.f32 %v544, %v549
    %v552 = vadd.f32 %v545, %v550
    %v553 = vld [vmem:[#allocation2 + $0x10] sm:$0xff]
    %v554 = vld [vmem:[#allocation2 + $0x38] sm:$0xff]
    %v555 = vperm.slane %v439, 0
    %v556 = vmul.f32 %v553, %v555
    %v557 = vmul.f32 %v554, %v555
    %v558 = vadd.f32 %v551, %v556
    %v559 = vadd.f32 %v552, %v557
    %v560 = vld [vmem:[#allocation2 + $0x11] sm:$0xff]
    %v561 = vld [vmem:[#allocation2 + $0x39] sm:$0xff]
    %v562 = vperm.slane %v439, 1
    %v563 = vmul.f32 %v560, %v562
    %v564 = vmul.f32 %v561, %v562
    %v565 = vadd.f32 %v558, %v563
    %v566 = vadd.f32 %v559, %v564
    %v567 = vld [vmem:[#allocation2 + $0x12] sm:$0xff]
    %v568 = vld [vmem:[#allocation2 + $0x3a] sm:$0xff]
    %v569 = vperm.slane %v439, 2
    %v570 = vmul.f32 %v567, %v569
    %v571 = vmul.f32 %v568, %v569
    %v572 = vadd.f32 %v565, %v570
    %v573 = vadd.f32 %v566, %v571
    %v574 = vld [vmem:[#allocation2 + $0x13] sm:$0xff]
    %v575 = vld [vmem:[#allocation2 + $0x3b] sm:$0xff]
    %v576 = vperm.slane %v439, 3
    %v577 = vmul.f32 %v574, %v576
    %v578 = vmul.f32 %v575, %v576
    %v579 = vadd.f32 %v572, %v577
    %v580 = vadd.f32 %v573, %v578
    %v581 = vld [vmem:[#allocation2 + $0x14] sm:$0xff]
    %v582 = vld [vmem:[#allocation2 + $0x3c] sm:$0xff]
    %v583 = vperm.slane %v439, 4
    %v584 = vmul.f32 %v581, %v583
    %v585 = vmul.f32 %v582, %v583
    %v586 = vadd.f32 %v579, %v584
    %v587 = vadd.f32 %v580, %v585
    %v588 = vld [vmem:[#allocation2 + $0x15] sm:$0xff]
    %v589 = vld [vmem:[#allocation2 + $0x3d] sm:$0xff]
    %v590 = vperm.slane %v439, 5
    %v591 = vmul.f32 %v588, %v590
    %v592 = vmul.f32 %v589, %v590
    %v593 = vadd.f32 %v586, %v591
    %v594 = vadd.f32 %v587, %v592
    %v595 = vld [vmem:[#allocation2 + $0x16] sm:$0xff]
    %v596 = vld [vmem:[#allocation2 + $0x3e] sm:$0xff]
    %v597 = vperm.slane %v439, 6
    %v598 = vmul.f32 %v595, %v597
    %v599 = vmul.f32 %v596, %v597
    %v600 = vadd.f32 %v593, %v598
    %v601 = vadd.f32 %v594, %v599
    %v602 = vld [vmem:[#allocation2 + $0x17] sm:$0xff]
    %v603 = vld [vmem:[#allocation2 + $0x3f] sm:$0xff]
    %v604 = vperm.slane %v439, 7
    %v605 = vmul.f32 %v602, %v604
    %v606 = vmul.f32 %v603, %v604
    %v607 = vadd.f32 %v600, %v605
    %v608 = vadd.f32 %v601, %v606
    %v609 = vld [vmem:[#allocation2 + $0x18] sm:$0xff]
    %v610 = vld [vmem:[#allocation2 + $0x40] sm:$0xff]
    %v611 = vperm.slane %v440, 0
    %v612 = vmul.f32 %v609, %v611
    %v613 = vmul.f32 %v610, %v611
    %v614 = vadd.f32 %v607, %v612
    %v615 = vadd.f32 %v608, %v613
    %v616 = vld [vmem:[#allocation2 + $0x19] sm:$0xff]
    %v617 = vld [vmem:[#allocation2 + $0x41] sm:$0xff]
    %v618 = vperm.slane %v440, 1
    %v619 = vmul.f32 %v616, %v618
    %v620 = vmul.f32 %v617, %v618
    %v621 = vadd.f32 %v614, %v619
    %v622 = vadd.f32 %v615, %v620
    %v623 = vld [vmem:[#allocation2 + $0x1a] sm:$0xff]
    %v624 = vld [vmem:[#allocation2 + $0x42] sm:$0xff]
    %v625 = vperm.slane %v440, 2
    %v626 = vmul.f32 %v623, %v625
    %v627 = vmul.f32 %v624, %v625
    %v628 = vadd.f32 %v621, %v626
    %v629 = vadd.f32 %v622, %v627
    %v630 = vld [vmem:[#allocation2 + $0x1b] sm:$0xff]
    %v631 = vld [vmem:[#allocation2 + $0x43] sm:$0xff]
    %v632 = vperm.slane %v440, 3
    %v633 = vmul.f32 %v630, %v632
    %v634 = vmul.f32 %v631, %v632
    %v635 = vadd.f32 %v628, %v633
    %v636 = vadd.f32 %v629, %v634
    %v637 = vld [vmem:[#allocation2 + $0x1c] sm:$0xff]
    %v638 = vld [vmem:[#allocation2 + $0x44] sm:$0xff]
    %v639 = vperm.slane %v440, 4
    %v640 = vmul.f32 %v637, %v639
    %v641 = vmul.f32 %v638, %v639
    %v642 = vadd.f32 %v635, %v640
    %v643 = vadd.f32 %v636, %v641
    %v644 = vld [vmem:[#allocation2 + $0x1d] sm:$0xff]
    %v645 = vld [vmem:[#allocation2 + $0x45] sm:$0xff]
    %v646 = vperm.slane %v440, 5
    %v647 = vmul.f32 %v644, %v646
    %v648 = vmul.f32 %v645, %v646
    %v649 = vadd.f32 %v642, %v647
    %v650 = vadd.f32 %v643, %v648
    %v651 = vld [vmem:[#allocation2 + $0x1e] sm:$0xff]
    %v652 = vld [vmem:[#allocation2 + $0x46] sm:$0xff]
    %v653 = vperm.slane %v440, 6
    %v654 = vmul.f32 %v651, %v653
    %v655 = vmul.f32 %v652, %v653
    %v656 = vadd.f32 %v649, %v654
    %v657 = vadd.f32 %v650, %v655
    %660 = vrot.lane.b32.xlu0 %v656, 96
    %v661 = vpop.permute.xlu0 %660
    %662 = vrot.lane.b32.xlu0 %v657, 96
    %v663 = vpop.permute.xlu0 %662
    %v666 = vadd.f32 %v656, %v661
    %v667 = vadd.f32 %v657, %v663
    %v668 = vld [vmem:[%s7] sm:$0x1]
    %v670 = vperm.slane %v668, 0
    %v672 = vadd.f32 %v666, %v670
    %v673 = vadd.f32 %v667, %v670
    %v674 = vmin.f32 %v672, 20.0
    %v675 = vmin.f32 %v673, 20.0
    %v676 = vmul.f32 %v674, 1.442695
    %v677 = vpow.pop %v676
    %v678 = vmul.f32 %v675, 1.442695
    %v679 = vpow.pop %v678
    %v680 = vadd.f32 %v677, 1.0
    %v681 = vadd.f32 %v679, 1.0
    %v682 = vmul.f32 %v680, %v680
    %v683 = vmul.f32 %v681, %v681
    %v684 = vsub.f32 %v682, 1.0
    %v685 = vsub.f32 %v683, 1.0
    %v686 = vmul.f32 %v672, %v684
    %v687 = vmul.f32 %v673, %v685
    %v688 = vadd.f32 %v682, 1.0
    %v689 = vadd.f32 %v683, 1.0
    %v690 = vrcp.pop %v688
    %v691 = vrcp.pop %v689
    %v692 = vmul.f32 %v686, %v690
    %v693 = vmul.f32 %v687, %v691
    %v694 = vadd.f32 %v692, %v112
    %v695 = vadd.f32 %v693, %v115
    %696 = vst.msk [vmem:[#allocation8] sm:$0xff] %vm117, %v694
    %697 = vst.msk [vmem:[#allocation8 + $0x8] sm:$0xff] %vm117, %v695
    // Predicated region
    $region42: #{tpu_custom_call.1} parent=1 // pred_check
      _
    $region43: #{tpu_custom_call.1} parent=1 // pred_check_branch
      %699 = sbr.rel (0) target = $region45
    $region44: #{tpu_custom_call.1} parent=1 // pred_region
      %701 = vsyncadd [#allocation5], 0
      %s702 = sshll.u32 [#allocation8], 4
      %s703 = int_to_ptr.vmem [resolvable:$true] %s702
      %s704 = sshll.u32 %s8, 4
      %s705 = int_to_ptr.hbm [resolvable:$true] %s704
      %710 = dma.vmem_to_hbm [thread:$0]  %s703, 256, %s705, [#allocation5], 128, 128, 8
    $region45: #{tpu_custom_call.1} parent=1 // pred_fallthru
      _
    // Predicated region
    $region46: #{tpu_custom_call.1} parent=1 // pred_check
      _
    $region47: #{tpu_custom_call.1} parent=1 // pred_check_branch
      %712 = sbr.rel (0) target = $region49
    $region48: #{tpu_custom_call.1} parent=1 // pred_region
      %714 = dma.done [#allocation5], 256
    $region49: #{tpu_custom_call.1} parent=1 // pred_fallthru
      _
    %715 = vsyncpa [#allocation4], 1
    %716 = vsyncpa [#allocation7], 1
    %717 = vsyncpa [#allocation5], 1

</llo_original>
